<compile_context>
chip_gen: v5e
topology: v5e:2x2
jax: 0.10.0
libtpu: 0.0.40
codegen_flags: <defaults>
</compile_context>

<pallas_src>
import functools

import jax
import jax.numpy as jnp
from jax.experimental import pallas as pl
from jax.experimental.pallas import tpu as pltpu


# ---------------------------------------------------------------------------
# Fixed edge-detector masks (same 3x3 pattern for every output channel).
# ---------------------------------------------------------------------------
MASKS = {
    "sbx": jnp.array([[1.0, 0.0, -1.0],
                      [2.0, 0.0, -2.0],
                      [1.0, 0.0, -1.0]], jnp.float32),
    "sby": jnp.array([[1.0, 2.0, 1.0],
                      [0.0, 0.0, 0.0],
                      [-1.0, -2.0, -1.0]], jnp.float32),
    "lpl": jnp.array([[0.0, 1.0, 0.0],
                      [1.0, -4.0, 1.0],
                      [0.0, 1.0, 0.0]], jnp.float32),
}


def _taps(w):
    """(O, I, 3, 3) -> (9, I, O): per-tap (Cin, Cout) matrices, k = kh*3 + kw."""
    return jnp.transpose(w, (2, 3, 1, 0)).reshape(9, w.shape[1], w.shape[0])


def fold_ecb_params(p, cin, cout, with_idt):
    """Fold every ECB branch into one effective 3x3 conv (exact by linearity).

    The zero-padded input makes the 1x1 outputs on the border equal their bias,
    which is exactly PyTorch's pad-then-overwrite-border trick, so substituting
    y0 = x_pad @ W0 + b0 at *every* padded position is exact.
    """
    hp = jax.lax.Precision.HIGHEST
    w_eff = _taps(p["wa"]).astype(jnp.float32)                       # (9, Cin, Cout)
    b_eff = p["ba"].astype(jnp.float32)

    # conv1x1 -> conv3x3
    w0 = p["k0"][:, :, 0, 0].T.astype(jnp.float32)                   # (Cin, Mid)
    k1t = _taps(p["k1"]).astype(jnp.float32)                         # (9, Mid, Cout)
    w_eff = w_eff + jnp.einsum("im,kmo->kio", w0, k1t, precision=hp)
    b_eff = b_eff + p["b1"] + jnp.einsum(
        "m,kmo->o", p["b0"].astype(jnp.float32), k1t, precision=hp)

    # conv1x1 -> {sobel-x, sobel-y, laplacian}  (depthwise masks)
    for name in ("sbx", "sby", "lpl"):
        w0e = p[f"{name}_k0"][:, :, 0, 0].T.astype(jnp.float32)      # (Cin, Cout)
        m = p[f"{name}_scale"].reshape(cout, 1, 1) * MASKS[name][None]  # (Cout,3,3)
        m = jnp.transpose(m, (1, 2, 0)).reshape(9, cout)             # (9, Cout)
        w_eff = w_eff + w0e[None, :, :] * m[:, None, :]
        b_eff = b_eff + p[f"{name}_b0"] * m.sum(axis=0) + p[f"{name}_bias"]

    if with_idt:                                     # identity == center tap
        w_eff = w_eff.at[4].add(jnp.eye(cin, dtype=jnp.float32))
    return w_eff, b_eff


# ---------------------------------------------------------------------------
# Pallas kernel: one padded row strip of the folded 3x3 conv + bias + PReLU.
# ---------------------------------------------------------------------------
def ecb_kernel(x_ref, w_ref, b_ref, slope_ref, out_ref, *, wp):
    """
    x_ref:     ((TH+2)*Wp + 2, Cin)  flattened zero-padded input strip
    w_ref:     (9, Cin, Cout)        folded per-tap weights
    b_ref:     (1, Cout) f32         folded bias
    slope_ref: (1, Cout) f32         PReLU slope
    out_ref:   (TH*Wp, Cout) f32     flattened output strip (rows are Wp wide;
                                     the last 2 columns of each row are scratch
                                     and are cropped by the wrapper)
    """
    m = out_ref.shape[0]
    acc = jnp.zeros(out_ref.shape, jnp.float32)
    # Nine MXU matmuls with a large, row-batched M dimension; f32 accumulation.
    for kh in range(3):
        for kw in range(3):
            off = kh * wp + kw
            acc = acc + jnp.dot(x_ref[pl.ds(off, m), :], w_ref[kh * 3 + kw],
                                preferred_element_type=jnp.float32)
    y = acc + b_ref[...]
    y = jnp.where(y >= 0.0, y, slope_ref[...] * y)       # PReLU
    out_ref[...] = y.astype(out_ref.dtype)


# ---------------------------------------------------------------------------
# Wrapper: NCHW <-> NHWC glue, weight folding, strip construction, pallas_call.
# ---------------------------------------------------------------------------
def _pick_strip_rows(H, Wp, cin, cout, itemsize_in, budget=2 << 20):
    """Largest divisor of H keeping per-strip input/output buffers <= budget."""
    th = 1
    for d in range(1, H + 1):
        if H % d != 0:
            continue
        in_b = (d + 2) * Wp * cin * itemsize_in
        out_b = d * Wp * cout * 4
        if max(in_b, out_b) <= budget:
            th = d
    return th


def ecb_forward_pallas(x_nchw, p, with_idt=False, *, use_bf16=False,
                       strip_rows=None):
    N, cin, H, W = x_nchw.shape
    cout = p["wa"].shape[0]
    Hp, Wp = H + 2, W + 2

    w_eff, b_eff = fold_ecb_params(p, cin, cout, with_idt)
    b2 = b_eff.reshape(1, cout).astype(jnp.float32)
    slope = p["prelu"].reshape(1, cout).astype(jnp.float32)

    cdt = jnp.bfloat16 if use_bf16 else jnp.float32
    itemsize_in = 2 if use_bf16 else 4

    th = strip_rows if strip_rows is not None else _pick_strip_rows(
        H, Wp, cin, cout, itemsize_in)
    assert H % th == 0, "strip_rows must divide H"
    ns = H // th                     # number of row strips per image
    G = N * ns                       # grid size
    L = (th + 2) * Wp + 2            # flat strip length (+2 keeps the last tap's
                                     # slice in bounds; those values are unused)
    M = th * Wp                      # matmul M dimension per strip

    # NCHW -> NHWC, zero pad, flatten rows, carve overlapping 2-row-halo strips.
    x = jnp.transpose(x_nchw, (0, 2, 3, 1)).astype(jnp.float32)
    xp = jnp.pad(x, ((0, 0), (1, 1), (1, 1), (0, 0)))                # (N, Hp, Wp, Cin)
    xf = jnp.pad(xp.reshape(N, Hp * Wp, cin), ((0, 0), (0, 2), (0, 0)))
    idx = (jnp.arange(ns) * (th * Wp))[:, None] + jnp.arange(L)[None, :]
    x_strips = xf[:, idx].reshape(G, L, cin).astype(cdt)             # (G, L, Cin)

    w_k = w_eff.astype(cdt)                                          # (9, Cin, Cout)

    kernel = functools.partial(ecb_kernel, wp=Wp)
    out = pl.pallas_call(
        kernel,
        out_shape=jax.ShapeDtypeStruct((G, M, cout), jnp.float32),
        grid_spec=pltpu.PrefetchScalarGridSpec(
            num_scalar_prefetch=0,
            grid=(G,),
            in_specs=[
                pl.BlockSpec((None, L, cin), lambda i: (i, 0, 0)),
                pl.BlockSpec((9, cin, cout), lambda i: (0, 0, 0)),
                pl.BlockSpec((1, cout), lambda i: (0, 0)),
                pl.BlockSpec((1, cout), lambda i: (0, 0)),
            ],
            out_specs=pl.BlockSpec((None, M, cout), lambda i: (i, 0, 0)),
        ),
        compiler_params=pltpu.CompilerParams(
            dimension_semantics=("parallel",)),
    )(x_strips, w_k, b2, slope)

    y = out.reshape(N, ns, th, Wp, cout)[:, :, :, :W, :]             # crop scratch cols
    y = y.reshape(N, H, W, cout)
    return jnp.transpose(y, (0, 3, 1, 2))                            # back to NCHW


# ---------------------------------------------------------------------------
# Deterministic parameter initialization (shapes mirror ECB.__init__).
# ---------------------------------------------------------------------------
def init_params(key, cin, cout, mid):
    ks = iter(jax.random.split(key, 32))

    def rnd(shape, s=0.1):
        return (jax.random.normal(next(ks), shape) * s).astype(jnp.float32)

    p = {
        "wa": rnd((cout, cin, 3, 3)), "ba": rnd((cout,)),            # conv3x3
        "k0": rnd((mid, cin, 1, 1)),  "b0": rnd((mid,)),             # 1x1 of 1x1-3x3
        "k1": rnd((cout, mid, 3, 3)), "b1": rnd((cout,)),            # 3x3 of 1x1-3x3
        "prelu": jnp.full((cout,), 0.25, jnp.float32),               # PReLU default
    }
    for name in ("sbx", "sby", "lpl"):
        p[f"{name}_k0"] = rnd((cout, cin, 1, 1))
        p[f"{name}_b0"] = rnd((cout,))
        p[f"{name}_scale"] = rnd((cout,), s=1e-3)
        p[f"{name}_bias"] = rnd((cout,), s=1e-3)
    return p


# ---------------------------------------------------------------------------
# Pure-JAX reference (mirrors the PyTorch forward literally) for validation.
# ---------------------------------------------------------------------------
def ecb_reference(x, p, with_idt=False):
    cout = p["wa"].shape[0]

    def conv(z, w, b, pad, groups=1):
        y = jax.lax.conv_general_dilated(
            z, w, (1, 1), [(pad, pad), (pad, pad)],
            dimension_numbers=("NCHW", "OIHW", "NCHW"),
            feature_group_count=groups,
            precision=jax.lax.Precision.HIGHEST)
        return y + b.reshape(1, -1, 1, 1)

    def pad_with_bias(y0, b):
        y0 = jnp.pad(y0, ((0, 0), (0, 0), (1, 1), (1, 1)))
        bb = b.reshape(1, -1, 1, 1)
        y0 = y0.at[:, :, 0:1, :].set(bb)
        y0 = y0.at[:, :, -1:, :].set(bb)
        y0 = y0.at[:, :, :, 0:1].set(bb)
        y0 = y0.at[:, :, :, -1:].set(bb)
        return y0

    y = conv(x, p["wa"], p["ba"], 1)

    y0 = pad_with_bias(conv(x, p["k0"], p["b0"], 0), p["b0"])
    y = y + conv(y0, p["k1"], p["b1"], 0)

    for name in ("sbx", "sby", "lpl"):
        y0 = pad_with_bias(conv(x, p[f"{name}_k0"], p[f"{name}_b0"], 0),
                           p[f"{name}_b0"])
        w = p[f"{name}_scale"].reshape(-1, 1, 1, 1) * MASKS[name][None, None]
        y = y + conv(y0, w, p[f"{name}_bias"], 0, groups=cout)

    if with_idt:
        y = y + x
    a = p["prelu"].reshape(1, -1, 1, 1)
    return jnp.where(y >= 0, y, a * y)


# ---------------------------------------------------------------------------
if __name__ == "__main__":
    key = jax.random.PRNGKey(0)
    kx, kp, kx2, kp2 = jax.random.split(key, 4)

    # -- Test 1: f32 path, no identity shortcut ----------------------------
    N, Cin, H, W = 2, 4, 16, 16
    Cout, depth_multiplier = 8, 2.0
    mid = int(Cout * depth_multiplier)
    x = jax.random.normal(kx, (N, Cin, H, W), jnp.float32)
    params = init_params(kp, Cin, Cout, mid)

    out = jax.block_until_ready(ecb_forward_pallas(x, params, with_idt=False))
    assert out.shape == (N, Cout, H, W) and out.dtype == jnp.float32
    ref = ecb_reference(x, params, with_idt=False)
    err = float(jnp.max(jnp.abs(out - ref)))
    assert err < 2e-2, f"f32 max abs err vs reference: {err}"

    # -- Test 2: bf16 MXU feed (v6e/v7x fast path), f32 accumulation -------
    out_bf16 = jax.block_until_ready(
        ecb_forward_pallas(x, params, with_idt=False, use_bf16=True))
    err_bf16 = float(jnp.max(jnp.abs(out_bf16 - ref)))
    assert err_bf16 < 1e-1, f"bf16 max abs err vs reference: {err_bf16}"

    # -- Test 3: identity shortcut + multi-strip (2-row halo) grid ---------
    N2, C2, H2, W2 = 1, 8, 32, 16
    x2 = jax.random.normal(kx2, (N2, C2, H2, W2), jnp.float32)
    params2 = init_params(kp2, C2, C2, C2)
    out2 = jax.block_until_ready(
        ecb_forward_pallas(x2, params2, with_idt=True, strip_rows=16))
    ref2 = ecb_reference(x2, params2, with_idt=True)
    err2 = float(jnp.max(jnp.abs(out2 - ref2)))
    assert err2 < 2e-2, f"with_idt max abs err vs reference: {err2}"

    print("KERNEL_OK")
</pallas_src>

<mosaic_0001>
module attributes {stable_mosaic.version = 11 : i64} {
  func.func @ecb_kernel(%arg0: i32, %arg1: memref<1x326x4xf32, #tpu.memory_space<vmem>>, %arg2: memref<9x4x8xf32, #tpu.memory_space<vmem>>, %arg3: memref<1x8xf32, #tpu.memory_space<vmem>>, %arg4: memref<1x8xf32, #tpu.memory_space<vmem>>, %arg5: memref<1x288x8xf32, #tpu.memory_space<vmem>>) attributes {dimension_semantics = [#tpu.dimension_semantics<parallel>], iteration_bounds = array<i64: 2>, scalar_prefetch = 0 : i64, scratch_operands = 0 : i64, tpu.core_type = #tpu.core_type<tc>, window_params = [{transform_indices = @transform_0, window_bounds = array<i64: 1, 326, 4>}, {pipeline_mode = #tpu.pipeline_mode<synchronous>, transform_indices = @transform_1, window_bounds = array<i64: 9, 4, 8>}, {pipeline_mode = #tpu.pipeline_mode<synchronous>, transform_indices = @transform_2, window_bounds = array<i64: 1, 8>}, {pipeline_mode = #tpu.pipeline_mode<synchronous>, transform_indices = @transform_3, window_bounds = array<i64: 1, 8>}, {transform_indices = @transform_4, window_bounds = array<i64: 1, 288, 8>}]} {
    %cst = arith.constant 0.000000e+00 : f32
    %0 = vector.broadcast %cst : f32 to vector<288x8xf32>
    %c0 = arith.constant 0 : index
    %c0_0 = arith.constant 0 : index
    %c0_1 = arith.constant 0 : index
    %1 = vector.load %arg1[%c0, %c0_0, %c0_1] : memref<1x326x4xf32, #tpu.memory_space<vmem>>, vector<1x288x4xf32>
    %2 = vector.shape_cast %1 : vector<1x288x4xf32> to vector<288x4xf32>
    %c0_2 = arith.constant 0 : index
    %c0_3 = arith.constant 0 : index
    %c0_4 = arith.constant 0 : index
    %3 = vector.load %arg2[%c0_2, %c0_3, %c0_4] : memref<9x4x8xf32, #tpu.memory_space<vmem>>, vector<1x4x8xf32>
    %4 = vector.shape_cast %3 : vector<1x4x8xf32> to vector<4x8xf32>
    %cst_5 = arith.constant dense<0.000000e+00> : vector<288x8xf32>
    %5 = tpu.matmul %2, %4, %cst_5 {dimension_numbers = #tpu.dot_dimension_numbers<[1], [0], [0], [1], [0, 0, 1, 1], [], []>} : vector<288x4xf32>, vector<4x8xf32>, vector<288x8xf32> -> vector<288x8xf32>
    %6 = arith.addf %0, %5 : vector<288x8xf32>
    %c0_6 = arith.constant 0 : index
    %c1 = arith.constant 1 : index
    %c0_7 = arith.constant 0 : index
    %7 = vector.load %arg1[%c0_6, %c1, %c0_7] : memref<1x326x4xf32, #tpu.memory_space<vmem>>, vector<1x288x4xf32>
    %8 = vector.shape_cast %7 : vector<1x288x4xf32> to vector<288x4xf32>
    %c1_8 = arith.constant 1 : index
    %c0_9 = arith.constant 0 : index
    %c0_10 = arith.constant 0 : index
    %9 = vector.load %arg2[%c1_8, %c0_9, %c0_10] : memref<9x4x8xf32, #tpu.memory_space<vmem>>, vector<1x4x8xf32>
    %10 = vector.shape_cast %9 : vector<1x4x8xf32> to vector<4x8xf32>
    %cst_11 = arith.constant dense<0.000000e+00> : vector<288x8xf32>
    %11 = tpu.matmul %8, %10, %cst_11 {dimension_numbers = #tpu.dot_dimension_numbers<[1], [0], [0], [1], [0, 0, 1, 1], [], []>} : vector<288x4xf32>, vector<4x8xf32>, vector<288x8xf32> -> vector<288x8xf32>
    %12 = arith.addf %6, %11 : vector<288x8xf32>
    %c0_12 = arith.constant 0 : index
    %c2 = arith.constant 2 : index
    %c0_13 = arith.constant 0 : index
    %13 = vector.load %arg1[%c0_12, %c2, %c0_13] : memref<1x326x4xf32, #tpu.memory_space<vmem>>, vector<1x288x4xf32>
    %14 = vector.shape_cast %13 : vector<1x288x4xf32> to vector<288x4xf32>
    %c2_14 = arith.constant 2 : index
    %c0_15 = arith.constant 0 : index
    %c0_16 = arith.constant 0 : index
    %15 = vector.load %arg2[%c2_14, %c0_15, %c0_16] : memref<9x4x8xf32, #tpu.memory_space<vmem>>, vector<1x4x8xf32>
    %16 = vector.shape_cast %15 : vector<1x4x8xf32> to vector<4x8xf32>
    %cst_17 = arith.constant dense<0.000000e+00> : vector<288x8xf32>
    %17 = tpu.matmul %14, %16, %cst_17 {dimension_numbers = #tpu.dot_dimension_numbers<[1], [0], [0], [1], [0, 0, 1, 1], [], []>} : vector<288x4xf32>, vector<4x8xf32>, vector<288x8xf32> -> vector<288x8xf32>
    %18 = arith.addf %12, %17 : vector<288x8xf32>
    %c0_18 = arith.constant 0 : index
    %c18 = arith.constant 18 : index
    %c0_19 = arith.constant 0 : index
    %19 = vector.load %arg1[%c0_18, %c18, %c0_19] : memref<1x326x4xf32, #tpu.memory_space<vmem>>, vector<1x288x4xf32>
    %20 = vector.shape_cast %19 : vector<1x288x4xf32> to vector<288x4xf32>
    %c3 = arith.constant 3 : index
    %c0_20 = arith.constant 0 : index
    %c0_21 = arith.constant 0 : index
    %21 = vector.load %arg2[%c3, %c0_20, %c0_21] : memref<9x4x8xf32, #tpu.memory_space<vmem>>, vector<1x4x8xf32>
    %22 = vector.shape_cast %21 : vector<1x4x8xf32> to vector<4x8xf32>
    %cst_22 = arith.constant dense<0.000000e+00> : vector<288x8xf32>
    %23 = tpu.matmul %20, %22, %cst_22 {dimension_numbers = #tpu.dot_dimension_numbers<[1], [0], [0], [1], [0, 0, 1, 1], [], []>} : vector<288x4xf32>, vector<4x8xf32>, vector<288x8xf32> -> vector<288x8xf32>
    %24 = arith.addf %18, %23 : vector<288x8xf32>
    %c0_23 = arith.constant 0 : index
    %c19 = arith.constant 19 : index
    %c0_24 = arith.constant 0 : index
    %25 = vector.load %arg1[%c0_23, %c19, %c0_24] : memref<1x326x4xf32, #tpu.memory_space<vmem>>, vector<1x288x4xf32>
    %26 = vector.shape_cast %25 : vector<1x288x4xf32> to vector<288x4xf32>
    %c4 = arith.constant 4 : index
    %c0_25 = arith.constant 0 : index
    %c0_26 = arith.constant 0 : index
    %27 = vector.load %arg2[%c4, %c0_25, %c0_26] : memref<9x4x8xf32, #tpu.memory_space<vmem>>, vector<1x4x8xf32>
    %28 = vector.shape_cast %27 : vector<1x4x8xf32> to vector<4x8xf32>
    %cst_27 = arith.constant dense<0.000000e+00> : vector<288x8xf32>
    %29 = tpu.matmul %26, %28, %cst_27 {dimension_numbers = #tpu.dot_dimension_numbers<[1], [0], [0], [1], [0, 0, 1, 1], [], []>} : vector<288x4xf32>, vector<4x8xf32>, vector<288x8xf32> -> vector<288x8xf32>
    %30 = arith.addf %24, %29 : vector<288x8xf32>
    %c0_28 = arith.constant 0 : index
    %c20 = arith.constant 20 : index
    %c0_29 = arith.constant 0 : index
    %31 = vector.load %arg1[%c0_28, %c20, %c0_29] : memref<1x326x4xf32, #tpu.memory_space<vmem>>, vector<1x288x4xf32>
    %32 = vector.shape_cast %31 : vector<1x288x4xf32> to vector<288x4xf32>
    %c5 = arith.constant 5 : index
    %c0_30 = arith.constant 0 : index
    %c0_31 = arith.constant 0 : index
    %33 = vector.load %arg2[%c5, %c0_30, %c0_31] : memref<9x4x8xf32, #tpu.memory_space<vmem>>, vector<1x4x8xf32>
    %34 = vector.shape_cast %33 : vector<1x4x8xf32> to vector<4x8xf32>
    %cst_32 = arith.constant dense<0.000000e+00> : vector<288x8xf32>
    %35 = tpu.matmul %32, %34, %cst_32 {dimension_numbers = #tpu.dot_dimension_numbers<[1], [0], [0], [1], [0, 0, 1, 1], [], []>} : vector<288x4xf32>, vector<4x8xf32>, vector<288x8xf32> -> vector<288x8xf32>
    %36 = arith.addf %30, %35 : vector<288x8xf32>
    %c0_33 = arith.constant 0 : index
    %c36 = arith.constant 36 : index
    %c0_34 = arith.constant 0 : index
    %37 = vector.load %arg1[%c0_33, %c36, %c0_34] : memref<1x326x4xf32, #tpu.memory_space<vmem>>, vector<1x288x4xf32>
    %38 = vector.shape_cast %37 : vector<1x288x4xf32> to vector<288x4xf32>
    %c6 = arith.constant 6 : index
    %c0_35 = arith.constant 0 : index
    %c0_36 = arith.constant 0 : index
    %39 = vector.load %arg2[%c6, %c0_35, %c0_36] : memref<9x4x8xf32, #tpu.memory_space<vmem>>, vector<1x4x8xf32>
    %40 = vector.shape_cast %39 : vector<1x4x8xf32> to vector<4x8xf32>
    %cst_37 = arith.constant dense<0.000000e+00> : vector<288x8xf32>
    %41 = tpu.matmul %38, %40, %cst_37 {dimension_numbers = #tpu.dot_dimension_numbers<[1], [0], [0], [1], [0, 0, 1, 1], [], []>} : vector<288x4xf32>, vector<4x8xf32>, vector<288x8xf32> -> vector<288x8xf32>
    %42 = arith.addf %36, %41 : vector<288x8xf32>
    %c0_38 = arith.constant 0 : index
    %c37 = arith.constant 37 : index
    %c0_39 = arith.constant 0 : index
    %43 = vector.load %arg1[%c0_38, %c37, %c0_39] : memref<1x326x4xf32, #tpu.memory_space<vmem>>, vector<1x288x4xf32>
    %44 = vector.shape_cast %43 : vector<1x288x4xf32> to vector<288x4xf32>
    %c7 = arith.constant 7 : index
    %c0_40 = arith.constant 0 : index
    %c0_41 = arith.constant 0 : index
    %45 = vector.load %arg2[%c7, %c0_40, %c0_41] : memref<9x4x8xf32, #tpu.memory_space<vmem>>, vector<1x4x8xf32>
    %46 = vector.shape_cast %45 : vector<1x4x8xf32> to vector<4x8xf32>
    %cst_42 = arith.constant dense<0.000000e+00> : vector<288x8xf32>
    %47 = tpu.matmul %44, %46, %cst_42 {dimension_numbers = #tpu.dot_dimension_numbers<[1], [0], [0], [1], [0, 0, 1, 1], [], []>} : vector<288x4xf32>, vector<4x8xf32>, vector<288x8xf32> -> vector<288x8xf32>
    %48 = arith.addf %42, %47 : vector<288x8xf32>
    %c0_43 = arith.constant 0 : index
    %c38 = arith.constant 38 : index
    %c0_44 = arith.constant 0 : index
    %49 = vector.load %arg1[%c0_43, %c38, %c0_44] : memref<1x326x4xf32, #tpu.memory_space<vmem>>, vector<1x288x4xf32>
    %50 = vector.shape_cast %49 : vector<1x288x4xf32> to vector<288x4xf32>
    %c8 = arith.constant 8 : index
    %c0_45 = arith.constant 0 : index
    %c0_46 = arith.constant 0 : index
    %51 = vector.load %arg2[%c8, %c0_45, %c0_46] : memref<9x4x8xf32, #tpu.memory_space<vmem>>, vector<1x4x8xf32>
    %52 = vector.shape_cast %51 : vector<1x4x8xf32> to vector<4x8xf32>
    %cst_47 = arith.constant dense<0.000000e+00> : vector<288x8xf32>
    %53 = tpu.matmul %50, %52, %cst_47 {dimension_numbers = #tpu.dot_dimension_numbers<[1], [0], [0], [1], [0, 0, 1, 1], [], []>} : vector<288x4xf32>, vector<4x8xf32>, vector<288x8xf32> -> vector<288x8xf32>
    %54 = arith.addf %48, %53 : vector<288x8xf32>
    %c0_48 = arith.constant 0 : index
    %c0_49 = arith.constant 0 : index
    %55 = vector.load %arg3[%c0_48, %c0_49] : memref<1x8xf32, #tpu.memory_space<vmem>>, vector<1x8xf32>
    %56 = vector.broadcast %55 : vector<1x8xf32> to vector<288x8xf32>
    %57 = arith.addf %54, %56 : vector<288x8xf32>
    %cst_50 = arith.constant 0.000000e+00 : f32
    %58 = vector.broadcast %cst_50 : f32 to vector<288x8xf32>
    %59 = arith.cmpf oge, %57, %58 : vector<288x8xf32>
    %c0_51 = arith.constant 0 : index
    %c0_52 = arith.constant 0 : index
    %60 = vector.load %arg4[%c0_51, %c0_52] : memref<1x8xf32, #tpu.memory_space<vmem>>, vector<1x8xf32>
    %61 = vector.broadcast %60 : vector<1x8xf32> to vector<288x8xf32>
    %62 = arith.mulf %61, %57 : vector<288x8xf32>
    %63 = arith.select %59, %57, %62 : vector<288x8xi1>, vector<288x8xf32>
    %c0_53 = arith.constant 0 : index
    %c0_54 = arith.constant 0 : index
    %c0_55 = arith.constant 0 : index
    %64 = vector.load %arg5[%c0_53, %c0_54, %c0_55] : memref<1x288x8xf32, #tpu.memory_space<vmem>>, vector<1x288x8xf32>
    %65 = vector.shape_cast %64 : vector<1x288x8xf32> to vector<288x8xf32>
    %66 = vector.shape_cast %63 : vector<288x8xf32> to vector<1x288x8xf32>
    tpu.vector_store %arg5[%c0_53, %c0_54, %c0_55], %66 {strides = array<i32>} : memref<1x288x8xf32, #tpu.memory_space<vmem>>, vector<1x288x8xf32>,
    return
  }
  func.func @transform_0(%arg0: i32) -> (i32, i32, i32) {
    %c0_i32 = arith.constant 0 : i32
    %c0_i32_0 = arith.constant 0 : i32
    %c0_i32_1 = arith.constant 0 : i32
    return %arg0, %c0_i32, %c0_i32_0 : i32, i32, i32
  }
  func.func @transform_1(%arg0: i32) -> (i32, i32, i32) {
    %c0_i32 = arith.constant 0 : i32
    %c0_i32_0 = arith.constant 0 : i32
    %c0_i32_1 = arith.constant 0 : i32
    %c0_i32_2 = arith.constant 0 : i32
    return %c0_i32, %c0_i32_0, %c0_i32_1 : i32, i32, i32
  }
  func.func @transform_2(%arg0: i32) -> (i32, i32) {
    %c0_i32 = arith.constant 0 : i32
    %c0_i32_0 = arith.constant 0 : i32
    %c0_i32_1 = arith.constant 0 : i32
    return %c0_i32, %c0_i32_0 : i32, i32
  }
  func.func @transform_3(%arg0: i32) -> (i32, i32) {
    %c0_i32 = arith.constant 0 : i32
    %c0_i32_0 = arith.constant 0 : i32
    %c0_i32_1 = arith.constant 0 : i32
    return %c0_i32, %c0_i32_0 : i32, i32
  }
  func.func @transform_4(%arg0: i32) -> (i32, i32, i32) {
    %c0_i32 = arith.constant 0 : i32
    %c0_i32_0 = arith.constant 0 : i32
    %c0_i32_1 = arith.constant 0 : i32
    return %arg0, %c0_i32, %c0_i32_0 : i32, i32, i32
  }
}

</mosaic_0001>

<llo_original>
// kernel: tpu_custom_call.1
$region0: #{tpu_custom_call.1}
  #allocation0 [shape = 'u32[]', space=smem, size = 0x4, offset = 0x4, fixed_abs, tag = 'smem constant byte address 0x4 - core index']
  #allocation1 [shape = 'u32[72,128]{1,0:T(1,128)}', space=vmem, size = 0x9000, scoped, tag = 'internal scratch']
  %s0 = inlined_call_operand.vmem [shape: f32[2,326,4], index: 0, kind: input, shape index: {}]
  %s1 = inlined_call_operand.vmem [shape: f32[9,4,8], index: 1, kind: input, shape index: {}]
  %s2 = inlined_call_operand.vmem [shape: f32[1,8], index: 2, kind: input, shape index: {}]
  %s3 = inlined_call_operand.vmem [shape: f32[1,8], index: 3, kind: input, shape index: {}]
  %s4 = inlined_call_operand.vmem [shape: f32[2,288,8], index: 4, kind: output, shape index: {}]
  %s5 = sld [smem:[#allocation0]]
  $region49: #{tpu_custom_call.1} parent=0
    _
  %s7 = ssub.s32 1, %s5
  %s8 = scalar_select 0, %s7, %s5
  loop: start=0, step=1, limit=4
  $region2: #{tpu_custom_call.1} parent=0 // loop_pre_header
    _
  $region3: #{tpu_custom_call.1} parent=0 // loop_header
    %s10 = sphi 0, %s14
    %p11 = scmp.ge.s32.totalorder %s10, 4
    %s20 = sphi 0, %s22
    %s23 = sphi 0, %s20
    %s24 = sphi 0, %s23
    %s40 = sphi 0, %s24
    %s44 = sphi 0, %s44
    %s46 = sphi 0, %s44
    %s47 = sphi 0, %s46
    %s61 = sphi 0, %s47
    %s65 = sphi 0, %s65
    %s67 = sphi 0, %s65
    %s68 = sphi 0, %s67
    %s82 = sphi 0, %s68
    %s86 = sphi 0, %s86
    %s88 = sphi 0, %s86
    %s89 = sphi 0, %s88
    %s103 = sphi 0, %s89
    %s109 = sphi 0, %s111
    %s112 = sphi 0, %s109
    %s113 = sphi 0, %s112
    %s129 = sphi 0, %s113
  $region4: #{tpu_custom_call.1} parent=0 // loop_header_branch
    %13 = sbr.rel (%p11) target = $region8
  $region5: #{tpu_custom_call.1} parent=0 // loop_body
    %s15 = ssub.s32 %s10, 1
    %s16 = ssub.s32 %s10, 2
    %s17 = sadd.s32 %s10, 1
    %s18 = ssub.s32 %s10, %s17
    %p19 = scmp.eq.s32.totalorder %s18, 0
    %s21 = sadd.s32 %s20, 1
    %s22 = scalar_select %p19, %s20, %s21
    %p25 = pneg %p19
    %p26 = scmp.eq.s32.totalorder %s10, 1
    %p27 = por %p25, %p26
    %p28 = scmp.ne.s32.totalorder %s20, %s23
    %p29 = scmp.eq.s32.totalorder %s10, 0
    %p30 = por %p28, %p29
    %p31 = scmp.ne.s32.totalorder %s20, %s23
    %p32 = scmp.eq.s32.totalorder %s15, 1
    %p33 = por %p31, %p32
    %p34 = scmp.ne.s32.totalorder %s23, %s24
    %p35 = scmp.eq.s32.totalorder %s15, 0
    %p36 = por %p34, %p35
    %p37 = scmp.ne.s32.totalorder %s23, %s24
    %p38 = scmp.eq.s32.totalorder %s16, 1
    %p39 = por %p37, %p38
    %p41 = scmp.ne.s32.totalorder %s24, %s40
    %p42 = scmp.eq.s32.totalorder %s16, 0
    %p43 = por %p41, %p42
    %s45 = sadd.s32 %s44, 1
    %p48 = scmp.eq.s32.totalorder %s10, 1
    %p49 = scmp.ne.s32.totalorder %s44, %s46
    %p50 = scmp.eq.s32.totalorder %s10, 0
    %p51 = por %p49, %p50
    %p52 = scmp.ne.s32.totalorder %s44, %s46
    %p53 = scmp.eq.s32.totalorder %s15, 1
    %p54 = por %p52, %p53
    %p55 = scmp.ne.s32.totalorder %s46, %s47
    %p56 = scmp.eq.s32.totalorder %s15, 0
    %p57 = por %p55, %p56
    %p58 = scmp.ne.s32.totalorder %s46, %s47
    %p59 = scmp.eq.s32.totalorder %s16, 1
    %p60 = por %p58, %p59
    %p62 = scmp.ne.s32.totalorder %s47, %s61
    %p63 = scmp.eq.s32.totalorder %s16, 0
    %p64 = por %p62, %p63
    %s66 = sadd.s32 %s65, 1
    %p69 = scmp.eq.s32.totalorder %s10, 1
    %p70 = scmp.ne.s32.totalorder %s65, %s67
    %p71 = scmp.eq.s32.totalorder %s10, 0
    %p72 = por %p70, %p71
    %p73 = scmp.ne.s32.totalorder %s65, %s67
    %p74 = scmp.eq.s32.totalorder %s15, 1
    %p75 = por %p73, %p74
    %p76 = scmp.ne.s32.totalorder %s67, %s68
    %p77 = scmp.eq.s32.totalorder %s15, 0
    %p78 = por %p76, %p77
    %p79 = scmp.ne.s32.totalorder %s67, %s68
    %p80 = scmp.eq.s32.totalorder %s16, 1
    %p81 = por %p79, %p80
    %p83 = scmp.ne.s32.totalorder %s68, %s82
    %p84 = scmp.eq.s32.totalorder %s16, 0
    %p85 = por %p83, %p84
    %s87 = sadd.s32 %s86, 1
    %p90 = scmp.eq.s32.totalorder %s10, 1
    %p91 = scmp.ne.s32.totalorder %s86, %s88
    %p92 = scmp.eq.s32.totalorder %s10, 0
    %p93 = por %p91, %p92
    %p94 = scmp.ne.s32.totalorder %s86, %s88
    %p95 = scmp.eq.s32.totalorder %s15, 1
    %p96 = por %p94, %p95
    %p97 = scmp.ne.s32.totalorder %s88, %s89
    %p98 = scmp.eq.s32.totalorder %s15, 0
    %p99 = por %p97, %p98
    %p100 = scmp.ne.s32.totalorder %s88, %s89
    %p101 = scmp.eq.s32.totalorder %s16, 1
    %p102 = por %p100, %p101
    %p104 = scmp.ne.s32.totalorder %s89, %s103
    %p105 = scmp.eq.s32.totalorder %s16, 0
    %p106 = por %p104, %p105
    %s107 = ssub.s32 %s10, %s17
    %p108 = scmp.eq.s32.totalorder %s107, 0
    %s110 = sadd.s32 %s109, 1
    %s111 = scalar_select %p108, %s109, %s110
    %p114 = pneg %p108
    %p115 = scmp.eq.s32.totalorder %s10, 1
    %p116 = por %p114, %p115
    %p117 = scmp.ne.s32.totalorder %s109, %s112
    %p118 = scmp.eq.s32.totalorder %s10, 0
    %p119 = por %p117, %p118
    %p120 = scmp.ne.s32.totalorder %s109, %s112
    %p121 = scmp.eq.s32.totalorder %s15, 1
    %p122 = por %p120, %p121
    %p123 = scmp.ne.s32.totalorder %s112, %s113
    %p124 = scmp.eq.s32.totalorder %s15, 0
    %p125 = por %p123, %p124
    %p126 = scmp.ne.s32.totalorder %s112, %s113
    %p127 = scmp.eq.s32.totalorder %s16, 1
    %p128 = por %p126, %p127
    %p130 = scmp.ne.s32.totalorder %s113, %s129
    %p131 = scmp.eq.s32.totalorder %s16, 0
    %p132 = por %p130, %p131
    %p133 = scmp.le.s32.totalorder 1, %s10
    %p134 = scmp.lt.s32.totalorder %s10, 3
    %p135 = pnand %p133, %p134
    %p136 = pneg %p135
    // Predicated region
    $region9: #{tpu_custom_call.1} parent=5 // pred_check
      _
    $region10: #{tpu_custom_call.1} parent=5 // pred_check_branch
      %138 = sbr.rel (%p135) target = $region12
    $region11: #{tpu_custom_call.1} parent=5 // pred_region
      %s139 = ssub.s32 %s10, 1
      // Predicated region
      $region13: #{tpu_custom_call.1} parent=11 // pred_check
        %p140 = pneg %p57
      $region14: #{tpu_custom_call.1} parent=11 // pred_check_branch
        %142 = sbr.rel (%p140) target = $region16
      $region15: #{tpu_custom_call.1} parent=11 // pred_region
        _
      $region16: #{tpu_custom_call.1} parent=11 // pred_fallthru
        _
      // Predicated region
      $region17: #{tpu_custom_call.1} parent=11 // pred_check
        %p143 = pneg %p78
      $region18: #{tpu_custom_call.1} parent=11 // pred_check_branch
        %145 = sbr.rel (%p143) target = $region20
      $region19: #{tpu_custom_call.1} parent=11 // pred_region
        _
      $region20: #{tpu_custom_call.1} parent=11 // pred_fallthru
        _
      // Predicated region
      $region21: #{tpu_custom_call.1} parent=11 // pred_check
        %p146 = pneg %p99
      $region22: #{tpu_custom_call.1} parent=11 // pred_check_branch
        %148 = sbr.rel (%p146) target = $region24
      $region23: #{tpu_custom_call.1} parent=11 // pred_region
        _
      $region24: #{tpu_custom_call.1} parent=11 // pred_fallthru
        _
    $region12: #{tpu_custom_call.1} parent=5 // pred_fallthru
      _
    %p149 = scmp.lt.s32.totalorder %s10, 2
    // Predicated region
    $region25: #{tpu_custom_call.1} parent=5 // pred_check
      %p150 = pneg %p149
    $region26: #{tpu_custom_call.1} parent=5 // pred_check_branch
      %152 = sbr.rel (%p150) target = $region28
    $region27: #{tpu_custom_call.1} parent=5 // pred_region
      // Predicated region
      $region29: #{tpu_custom_call.1} parent=27 // pred_check
        %p153 = pneg %p30
      $region30: #{tpu_custom_call.1} parent=27 // pred_check_branch
        %155 = sbr.rel (%p153) target = $region32
      $region31: #{tpu_custom_call.1} parent=27 // pred_region
        %p156 = scmp.lt.s32.totalorder %s10, 1
        %s157 = scalar_select %p156, %s10, 1
        %s158 = smul.addr %s157, 41
        %s159 = smul.addr %s158, 8
        %s160 = scalar_lea.vmem %s0, %s159
      $region32: #{tpu_custom_call.1} parent=27 // pred_fallthru
        _
    $region28: #{tpu_custom_call.1} parent=5 // pred_fallthru
      _
    %p161 = scmp.le.s32.totalorder 1, %s10
    %p162 = scmp.lt.s32.totalorder %s10, 3
    %p163 = pnand %p161, %p162
    %p164 = pneg %p163
    // Predicated region
    $region33: #{tpu_custom_call.1} parent=5 // pred_check
      _
    $region34: #{tpu_custom_call.1} parent=5 // pred_check_branch
      %166 = sbr.rel (%p163) target = $region36
    $region35: #{tpu_custom_call.1} parent=5 // pred_region
      %s167 = ssub.s32 %s10, 1
      %p168 = scmp.lt.s32.totalorder %s15, 1
      %s169 = scalar_select %p168, %s15, 1
      %s170 = smul.addr %s169, 41
      %s171 = smul.addr %s170, 8
      %s172 = scalar_lea.vmem %s0, %s171
      %p173 = pneg %p36
      %p174 = pneg %p33
      %p175 = pneg %p57
      %p176 = pneg %p54
      %p177 = pneg %p78
      %p178 = pneg %p75
      %p179 = pneg %p99
      %p180 = pneg %p96
      %p181 = pneg %p125
      %p182 = pneg %p122
      %p183 = scmp.lt.s32.totalorder %s15, 1
      %s184 = scalar_select %p183, %s15, 1
      %s185 = smul.addr %s184, 36
      %s186 = smul.addr %s185, 8
      %s187 = scalar_lea.vmem %s4, %s186
      %p188 = scmp.lt.s32.totalorder %s15, 1
      %s189 = scalar_select %p188, %s15, 1
      %s190 = smul.addr %s189, 41
      %s191 = smul.addr %s190, 8
      %s192 = scalar_lea.vmem %s0, %s191
      %p193 = scmp.lt.s32.totalorder %s15, 1
      %s194 = scalar_select %p193, %s15, 1
      %s195 = smul.addr %s194, 36
      %s196 = smul.addr %s195, 8
      %s197 = scalar_lea.vmem %s4, %s196
      %v198 = vld [vmem:[%s192] sm:$0xff]
      %v199 = vld [vmem:[%s192 + $0x8] sm:$0xff]
      %v200 = vld [vmem:[%s192 + $0x10] sm:$0xff]
      %v201 = vld [vmem:[%s192 + $0x18] sm:$0xff]
      %v202 = vld [vmem:[%s192 + $0x20] sm:$0xff]
      %v203 = vld [vmem:[%s192 + $0x28] sm:$0xff]
      %v204 = vld [vmem:[%s192 + $0x30] sm:$0xff]
      %v205 = vld [vmem:[%s192 + $0x38] sm:$0xff]
      %v206 = vld [vmem:[%s192 + $0x40] sm:$0xff]
      %v207 = vld [vmem:[%s192 + $0x48] sm:$0xff]
      %v208 = vld [vmem:[%s192 + $0x50] sm:$0xff]
      %v209 = vld [vmem:[%s192 + $0x58] sm:$0xff]
      %v210 = vld [vmem:[%s192 + $0x60] sm:$0xff]
      %v211 = vld [vmem:[%s192 + $0x68] sm:$0xff]
      %v212 = vld [vmem:[%s192 + $0x70] sm:$0xff]
      %v213 = vld [vmem:[%s192 + $0x78] sm:$0xff]
      %v214 = vld [vmem:[%s192 + $0x80] sm:$0xff]
      %v215 = vld [vmem:[%s192 + $0x88] sm:$0xff]
      %v216 = vld [vmem:[%s192 + $0x90] sm:$0xff]
      %v217 = vld [vmem:[%s192 + $0x98] sm:$0xff]
      %v218 = vld [vmem:[%s192 + $0xa0] sm:$0xff]
      %v219 = vld [vmem:[%s192 + $0xa8] sm:$0xff]
      %v220 = vld [vmem:[%s192 + $0xb0] sm:$0xff]
      %v221 = vld [vmem:[%s192 + $0xb8] sm:$0xff]
      %v222 = vld [vmem:[%s192 + $0xc0] sm:$0xff]
      %v223 = vld [vmem:[%s192 + $0xc8] sm:$0xff]
      %v224 = vld [vmem:[%s192 + $0xd0] sm:$0xff]
      %v225 = vld [vmem:[%s192 + $0xd8] sm:$0xff]
      %v226 = vld [vmem:[%s192 + $0xe0] sm:$0xff]
      %v227 = vld [vmem:[%s192 + $0xe8] sm:$0xff]
      %v228 = vld [vmem:[%s192 + $0xf0] sm:$0xff]
      %v229 = vld [vmem:[%s192 + $0xf8] sm:$0xff]
      %v230 = vld [vmem:[%s192 + $0x100] sm:$0xff]
      %v231 = vld [vmem:[%s192 + $0x108] sm:$0xff]
      %v232 = vld [vmem:[%s192 + $0x110] sm:$0xff]
      %v233 = vld [vmem:[%s192 + $0x118] sm:$0xff]
      %v234 = vld [vmem:[%s1] sm:$0xf]
      %v235 = vld [vmem:[%s192 + $0x1] sm:$0xff]
      %v236 = vld [vmem:[%s192 + $0x9] sm:$0xff]
      %v237 = vld [vmem:[%s192 + $0x11] sm:$0xff]
      %v238 = vld [vmem:[%s192 + $0x19] sm:$0xff]
      %v239 = vld [vmem:[%s192 + $0x21] sm:$0xff]
      %v240 = vld [vmem:[%s192 + $0x29] sm:$0xff]
      %v241 = vld [vmem:[%s192 + $0x31] sm:$0xff]
      %v242 = vld [vmem:[%s192 + $0x39] sm:$0xff]
      %v243 = vld [vmem:[%s192 + $0x41] sm:$0xff]
      %v244 = vld [vmem:[%s192 + $0x49] sm:$0xff]
      %v245 = vld [vmem:[%s192 + $0x51] sm:$0xff]
      %v246 = vld [vmem:[%s192 + $0x59] sm:$0xff]
      %v247 = vld [vmem:[%s192 + $0x61] sm:$0xff]
      %v248 = vld [vmem:[%s192 + $0x69] sm:$0xff]
      %v249 = vld [vmem:[%s192 + $0x71] sm:$0xff]
      %v250 = vld [vmem:[%s192 + $0x79] sm:$0xff]
      %v251 = vld [vmem:[%s192 + $0x81] sm:$0xff]
      %v252 = vld [vmem:[%s192 + $0x89] sm:$0xff]
      %v253 = vld [vmem:[%s192 + $0x91] sm:$0xff]
      %v254 = vld [vmem:[%s192 + $0x99] sm:$0xff]
      %v255 = vld [vmem:[%s192 + $0xa1] sm:$0xff]
      %v256 = vld [vmem:[%s192 + $0xa9] sm:$0xff]
      %v257 = vld [vmem:[%s192 + $0xb1] sm:$0xff]
      %v258 = vld [vmem:[%s192 + $0xb9] sm:$0xff]
      %v259 = vld [vmem:[%s192 + $0xc1] sm:$0xff]
      %v260 = vld [vmem:[%s192 + $0xc9] sm:$0xff]
      %v261 = vld [vmem:[%s192 + $0xd1] sm:$0xff]
      %v262 = vld [vmem:[%s192 + $0xd9] sm:$0xff]
      %v263 = vld [vmem:[%s192 + $0xe1] sm:$0xff]
      %v264 = vld [vmem:[%s192 + $0xe9] sm:$0xff]
      %v265 = vld [vmem:[%s192 + $0xf1] sm:$0xff]
      %v266 = vld [vmem:[%s192 + $0xf9] sm:$0xff]
      %v267 = vld [vmem:[%s192 + $0x101] sm:$0xff]
      %v268 = vld [vmem:[%s192 + $0x109] sm:$0xff]
      %v269 = vld [vmem:[%s192 + $0x111] sm:$0xff]
      %v270 = vld [vmem:[%s192 + $0x119] sm:$0xff]
      %s271 = scalar_lea.vmem %s1, 4
      %v272 = vld [vmem:[%s271] sm:$0xf]
      %vm273 = vcmask 31744
      %v275 = vsel %vm273, %v235, 0
      %v278 = vsel %vm273, %v236, 0
      %v281 = vsel %vm273, %v237, 0
      %v284 = vsel %vm273, %v238, 0
      %v287 = vsel %vm273, %v239, 0
      %v290 = vsel %vm273, %v240, 0
      %v293 = vsel %vm273, %v241, 0
      %v296 = vsel %vm273, %v242, 0
      %v299 = vsel %vm273, %v243, 0
      %v302 = vsel %vm273, %v244, 0
      %v305 = vsel %vm273, %v245, 0
      %v308 = vsel %vm273, %v246, 0
      %v311 = vsel %vm273, %v247, 0
      %v314 = vsel %vm273, %v248, 0
      %v317 = vsel %vm273, %v249, 0
      %v320 = vsel %vm273, %v250, 0
      %v323 = vsel %vm273, %v251, 0
      %v326 = vsel %vm273, %v252, 0
      %v329 = vsel %vm273, %v253, 0
      %v332 = vsel %vm273, %v254, 0
      %v335 = vsel %vm273, %v255, 0
      %v338 = vsel %vm273, %v256, 0
      %v341 = vsel %vm273, %v257, 0
      %v344 = vsel %vm273, %v258, 0
      %v347 = vsel %vm273, %v259, 0
      %v350 = vsel %vm273, %v260, 0
      %v353 = vsel %vm273, %v261, 0
      %v356 = vsel %vm273, %v262, 0
      %v359 = vsel %vm273, %v263, 0
      %v362 = vsel %vm273, %v264, 0
      %v365 = vsel %vm273, %v265, 0
      %v368 = vsel %vm273, %v266, 0
      %v371 = vsel %vm273, %v267, 0
      %v374 = vsel %vm273, %v268, 0
      %v377 = vsel %vm273, %v269, 0
      %v380 = vsel %vm273, %v270, 0
      %vm382 = vcmask 1043456
      %v384 = vsel %vm382, %v272, 0
      %386 = vmatpush.msra.mxu0 0.0
      %387 = vmatpush.msra.mxu0 0.0
      %388 = vmatpush.msra.mxu0 0.0
      %389 = vmatpush.msra.mxu0 0.0
      %390 = vmatpush.msra.mxu0 0.0
      %391 = vmatpush.msra.mxu0 0.0
      %392 = vmatpush.msra.mxu0 0.0
      %393 = vmatpush.msra.mxu0 0.0
      %394 = vmatpush.msra.mxu0 0.0
      %395 = vmatpush.msra.mxu0 0.0
      %396 = vmatpush.msra.mxu0 0.0
      %397 = vmatpush.msra.mxu0 0.0
      %398 = vmatpush.msra.mxu0 0.0
      %399 = vmatpush.msra.mxu0 0.0
      %400 = vmatpush.msra.mxu0 0.0
      %401 = vmatpush.msra.mxu0 %v384
      %402 = vmatmul.f32.gmra.mxu0 %v275
      %v403 = vpop.f32.mrf.mxu0
      %v404 = vadd.f32 0.0, %v403
      %405 = vmatmul.f32.gmra.mxu0 %v278
      %v406 = vpop.f32.mrf.mxu0
      %v407 = vadd.f32 0.0, %v406
      %408 = vmatmul.f32.gmra.mxu0 %v281
      %v409 = vpop.f32.mrf.mxu0
      %v410 = vadd.f32 0.0, %v409
      %411 = vmatmul.f32.gmra.mxu0 %v284
      %v412 = vpop.f32.mrf.mxu0
      %v413 = vadd.f32 0.0, %v412
      %414 = vmatmul.f32.gmra.mxu0 %v287
      %v415 = vpop.f32.mrf.mxu0
      %v416 = vadd.f32 0.0, %v415
      %417 = vmatmul.f32.gmra.mxu0 %v290
      %v418 = vpop.f32.mrf.mxu0
      %v419 = vadd.f32 0.0, %v418
      %420 = vmatmul.f32.gmra.mxu0 %v293
      %v421 = vpop.f32.mrf.mxu0
      %v422 = vadd.f32 0.0, %v421
      %423 = vmatmul.f32.gmra.mxu0 %v296
      %v424 = vpop.f32.mrf.mxu0
      %v425 = vadd.f32 0.0, %v424
      %426 = vmatmul.f32.gmra.mxu0 %v299
      %v427 = vpop.f32.mrf.mxu0
      %v428 = vadd.f32 0.0, %v427
      %429 = vmatmul.f32.gmra.mxu0 %v302
      %v430 = vpop.f32.mrf.mxu0
      %v431 = vadd.f32 0.0, %v430
      %432 = vmatmul.f32.gmra.mxu0 %v305
      %v433 = vpop.f32.mrf.mxu0
      %v434 = vadd.f32 0.0, %v433
      %435 = vmatmul.f32.gmra.mxu0 %v308
      %v436 = vpop.f32.mrf.mxu0
      %v437 = vadd.f32 0.0, %v436
      %438 = vmatmul.f32.gmra.mxu0 %v311
      %v439 = vpop.f32.mrf.mxu0
      %v440 = vadd.f32 0.0, %v439
      %441 = vmatmul.f32.gmra.mxu0 %v314
      %v442 = vpop.f32.mrf.mxu0
      %v443 = vadd.f32 0.0, %v442
      %444 = vmatmul.f32.gmra.mxu0 %v317
      %v445 = vpop.f32.mrf.mxu0
      %v446 = vadd.f32 0.0, %v445
      %447 = vmatmul.f32.gmra.mxu0 %v320
      %v448 = vpop.f32.mrf.mxu0
      %v449 = vadd.f32 0.0, %v448
      %450 = vmatmul.f32.gmra.mxu0 %v323
      %v451 = vpop.f32.mrf.mxu0
      %v452 = vadd.f32 0.0, %v451
      %453 = vmatmul.f32.gmra.mxu0 %v326
      %v454 = vpop.f32.mrf.mxu0
      %v455 = vadd.f32 0.0, %v454
      %456 = vmatmul.f32.gmra.mxu0 %v329
      %v457 = vpop.f32.mrf.mxu0
      %v458 = vadd.f32 0.0, %v457
      %459 = vmatmul.f32.gmra.mxu0 %v332
      %v460 = vpop.f32.mrf.mxu0
      %v461 = vadd.f32 0.0, %v460
      %462 = vmatmul.f32.gmra.mxu0 %v335
      %v463 = vpop.f32.mrf.mxu0
      %v464 = vadd.f32 0.0, %v463
      %465 = vmatmul.f32.gmra.mxu0 %v338
      %v466 = vpop.f32.mrf.mxu0
      %v467 = vadd.f32 0.0, %v466
      %468 = vmatmul.f32.gmra.mxu0 %v341
      %v469 = vpop.f32.mrf.mxu0
      %v470 = vadd.f32 0.0, %v469
      %471 = vmatmul.f32.gmra.mxu0 %v344
      %v472 = vpop.f32.mrf.mxu0
      %v473 = vadd.f32 0.0, %v472
      %474 = vmatmul.f32.gmra.mxu0 %v347
      %v475 = vpop.f32.mrf.mxu0
      %v476 = vadd.f32 0.0, %v475
      %477 = vmatmul.f32.gmra.mxu0 %v350
      %v478 = vpop.f32.mrf.mxu0
      %v479 = vadd.f32 0.0, %v478
      %480 = vmatmul.f32.gmra.mxu0 %v353
      %v481 = vpop.f32.mrf.mxu0
      %v482 = vadd.f32 0.0, %v481
      %483 = vmatmul.f32.gmra.mxu0 %v356
      %v484 = vpop.f32.mrf.mxu0
      %v485 = vadd.f32 0.0, %v484
      %486 = vmatmul.f32.gmra.mxu0 %v359
      %v487 = vpop.f32.mrf.mxu0
      %v488 = vadd.f32 0.0, %v487
      %489 = vmatmul.f32.gmra.mxu0 %v362
      %v490 = vpop.f32.mrf.mxu0
      %v491 = vadd.f32 0.0, %v490
      %492 = vmatmul.f32.gmra.mxu0 %v365
      %v493 = vpop.f32.mrf.mxu0
      %v494 = vadd.f32 0.0, %v493
      %495 = vmatmul.f32.gmra.mxu0 %v368
      %v496 = vpop.f32.mrf.mxu0
      %v497 = vadd.f32 0.0, %v496
      %498 = vmatmul.f32.gmra.mxu0 %v371
      %v499 = vpop.f32.mrf.mxu0
      %v500 = vadd.f32 0.0, %v499
      %501 = vmatmul.f32.gmra.mxu0 %v374
      %v502 = vpop.f32.mrf.mxu0
      %v503 = vadd.f32 0.0, %v502
      %504 = vmatmul.f32.gmra.mxu0 %v377
      %v505 = vpop.f32.mrf.mxu0
      %v506 = vadd.f32 0.0, %v505
      %507 = vmatmul.f32.gmra.mxu0 %v380
      %v508 = vpop.f32.mrf.mxu0
      %v509 = vadd.f32 0.0, %v508
      %510 = vdwg.mxu0
      %v512 = vsel %vm273, %v198, 0
      %v515 = vsel %vm273, %v199, 0
      %v518 = vsel %vm273, %v200, 0
      %v521 = vsel %vm273, %v201, 0
      %v524 = vsel %vm273, %v202, 0
      %v527 = vsel %vm273, %v203, 0
      %v530 = vsel %vm273, %v204, 0
      %v533 = vsel %vm273, %v205, 0
      %v536 = vsel %vm273, %v206, 0
      %v539 = vsel %vm273, %v207, 0
      %v542 = vsel %vm273, %v208, 0
      %v545 = vsel %vm273, %v209, 0
      %v548 = vsel %vm273, %v210, 0
      %v551 = vsel %vm273, %v211, 0
      %v554 = vsel %vm273, %v212, 0
      %v557 = vsel %vm273, %v213, 0
      %v560 = vsel %vm273, %v214, 0
      %v563 = vsel %vm273, %v215, 0
      %v566 = vsel %vm273, %v216, 0
      %v569 = vsel %vm273, %v217, 0
      %v572 = vsel %vm273, %v218, 0
      %v575 = vsel %vm273, %v219, 0
      %v578 = vsel %vm273, %v220, 0
      %v581 = vsel %vm273, %v221, 0
      %v584 = vsel %vm273, %v222, 0
      %v587 = vsel %vm273, %v223, 0
      %v590 = vsel %vm273, %v224, 0
      %v593 = vsel %vm273, %v225, 0
      %v596 = vsel %vm273, %v226, 0
      %v599 = vsel %vm273, %v227, 0
      %v602 = vsel %vm273, %v228, 0
      %v605 = vsel %vm273, %v229, 0
      %v608 = vsel %vm273, %v230, 0
      %v611 = vsel %vm273, %v231, 0
      %v614 = vsel %vm273, %v232, 0
      %v617 = vsel %vm273, %v233, 0
      %v620 = vsel %vm382, %v234, 0
      %622 = vmatpush.msra.mxu0 0.0
      %623 = vmatpush.msra.mxu0 0.0
      %624 = vmatpush.msra.mxu0 0.0
      %625 = vmatpush.msra.mxu0 0.0
      %626 = vmatpush.msra.mxu0 0.0
      %627 = vmatpush.msra.mxu0 0.0
      %628 = vmatpush.msra.mxu0 0.0
      %629 = vmatpush.msra.mxu0 0.0
      %630 = vmatpush.msra.mxu0 0.0
      %631 = vmatpush.msra.mxu0 0.0
      %632 = vmatpush.msra.mxu0 0.0
      %633 = vmatpush.msra.mxu0 0.0
      %634 = vmatpush.msra.mxu0 0.0
      %635 = vmatpush.msra.mxu0 0.0
      %636 = vmatpush.msra.mxu0 0.0
      %637 = vmatpush.msra.mxu0 %v620
      %638 = vmatmul.f32.gmra.mxu0 %v512
      %v639 = vpop.f32.mrf.mxu0
      %v640 = vadd.f32 %v404, %v639
      %641 = vmatmul.f32.gmra.mxu0 %v515
      %v642 = vpop.f32.mrf.mxu0
      %v643 = vadd.f32 %v407, %v642
      %644 = vmatmul.f32.gmra.mxu0 %v518
      %v645 = vpop.f32.mrf.mxu0
      %v646 = vadd.f32 %v410, %v645
      %647 = vmatmul.f32.gmra.mxu0 %v521
      %v648 = vpop.f32.mrf.mxu0
      %v649 = vadd.f32 %v413, %v648
      %650 = vmatmul.f32.gmra.mxu0 %v524
      %v651 = vpop.f32.mrf.mxu0
      %v652 = vadd.f32 %v416, %v651
      %653 = vmatmul.f32.gmra.mxu0 %v527
      %v654 = vpop.f32.mrf.mxu0
      %v655 = vadd.f32 %v419, %v654
      %656 = vmatmul.f32.gmra.mxu0 %v530
      %v657 = vpop.f32.mrf.mxu0
      %v658 = vadd.f32 %v422, %v657
      %659 = vmatmul.f32.gmra.mxu0 %v533
      %v660 = vpop.f32.mrf.mxu0
      %v661 = vadd.f32 %v425, %v660
      %662 = vmatmul.f32.gmra.mxu0 %v536
      %v663 = vpop.f32.mrf.mxu0
      %v664 = vadd.f32 %v428, %v663
      %665 = vmatmul.f32.gmra.mxu0 %v539
      %v666 = vpop.f32.mrf.mxu0
      %v667 = vadd.f32 %v431, %v666
      %668 = vmatmul.f32.gmra.mxu0 %v542
      %v669 = vpop.f32.mrf.mxu0
      %v670 = vadd.f32 %v434, %v669
      %671 = vmatmul.f32.gmra.mxu0 %v545
      %v672 = vpop.f32.mrf.mxu0
      %v673 = vadd.f32 %v437, %v672
      %674 = vmatmul.f32.gmra.mxu0 %v548
      %v675 = vpop.f32.mrf.mxu0
      %v676 = vadd.f32 %v440, %v675
      %677 = vmatmul.f32.gmra.mxu0 %v551
      %v678 = vpop.f32.mrf.mxu0
      %v679 = vadd.f32 %v443, %v678
      %680 = vmatmul.f32.gmra.mxu0 %v554
      %v681 = vpop.f32.mrf.mxu0
      %v682 = vadd.f32 %v446, %v681
      %683 = vmatmul.f32.gmra.mxu0 %v557
      %v684 = vpop.f32.mrf.mxu0
      %v685 = vadd.f32 %v449, %v684
      %686 = vmatmul.f32.gmra.mxu0 %v560
      %v687 = vpop.f32.mrf.mxu0
      %v688 = vadd.f32 %v452, %v687
      %689 = vmatmul.f32.gmra.mxu0 %v563
      %v690 = vpop.f32.mrf.mxu0
      %v691 = vadd.f32 %v455, %v690
      %692 = vmatmul.f32.gmra.mxu0 %v566
      %v693 = vpop.f32.mrf.mxu0
      %v694 = vadd.f32 %v458, %v693
      %695 = vmatmul.f32.gmra.mxu0 %v569
      %v696 = vpop.f32.mrf.mxu0
      %v697 = vadd.f32 %v461, %v696
      %698 = vmatmul.f32.gmra.mxu0 %v572
      %v699 = vpop.f32.mrf.mxu0
      %v700 = vadd.f32 %v464, %v699
      %701 = vmatmul.f32.gmra.mxu0 %v575
      %v702 = vpop.f32.mrf.mxu0
      %v703 = vadd.f32 %v467, %v702
      %704 = vmatmul.f32.gmra.mxu0 %v578
      %v705 = vpop.f32.mrf.mxu0
      %v706 = vadd.f32 %v470, %v705
      %707 = vmatmul.f32.gmra.mxu0 %v581
      %v708 = vpop.f32.mrf.mxu0
      %v709 = vadd.f32 %v473, %v708
      %710 = vmatmul.f32.gmra.mxu0 %v584
      %v711 = vpop.f32.mrf.mxu0
      %v712 = vadd.f32 %v476, %v711
      %713 = vmatmul.f32.gmra.mxu0 %v587
      %v714 = vpop.f32.mrf.mxu0
      %v715 = vadd.f32 %v479, %v714
      %716 = vmatmul.f32.gmra.mxu0 %v590
      %v717 = vpop.f32.mrf.mxu0
      %v718 = vadd.f32 %v482, %v717
      %719 = vmatmul.f32.gmra.mxu0 %v593
      %v720 = vpop.f32.mrf.mxu0
      %v721 = vadd.f32 %v485, %v720
      %722 = vmatmul.f32.gmra.mxu0 %v596
      %v723 = vpop.f32.mrf.mxu0
      %v724 = vadd.f32 %v488, %v723
      %725 = vmatmul.f32.gmra.mxu0 %v599
      %v726 = vpop.f32.mrf.mxu0
      %v727 = vadd.f32 %v491, %v726
      %728 = vmatmul.f32.gmra.mxu0 %v602
      %v729 = vpop.f32.mrf.mxu0
      %v730 = vadd.f32 %v494, %v729
      %731 = vmatmul.f32.gmra.mxu0 %v605
      %v732 = vpop.f32.mrf.mxu0
      %v733 = vadd.f32 %v497, %v732
      %734 = vmatmul.f32.gmra.mxu0 %v608
      %v735 = vpop.f32.mrf.mxu0
      %v736 = vadd.f32 %v500, %v735
      %737 = vmatmul.f32.gmra.mxu0 %v611
      %v738 = vpop.f32.mrf.mxu0
      %v739 = vadd.f32 %v503, %v738
      %740 = vmatmul.f32.gmra.mxu0 %v614
      %v741 = vpop.f32.mrf.mxu0
      %v742 = vadd.f32 %v506, %v741
      %743 = vmatmul.f32.gmra.mxu0 %v617
      %v744 = vpop.f32.mrf.mxu0
      %v745 = vadd.f32 %v509, %v744
      %746 = vdwg.mxu0
      %v747 = vld [vmem:[%s192 + $0x2] sm:$0xff]
      %v748 = vld [vmem:[%s192 + $0xa] sm:$0xff]
      %v749 = vld [vmem:[%s192 + $0x12] sm:$0xff]
      %v750 = vld [vmem:[%s192 + $0x1a] sm:$0xff]
      %v751 = vld [vmem:[%s192 + $0x22] sm:$0xff]
      %v752 = vld [vmem:[%s192 + $0x2a] sm:$0xff]
      %v753 = vld [vmem:[%s192 + $0x32] sm:$0xff]
      %v754 = vld [vmem:[%s192 + $0x3a] sm:$0xff]
      %v755 = vld [vmem:[%s192 + $0x42] sm:$0xff]
      %v756 = vld [vmem:[%s192 + $0x4a] sm:$0xff]
      %v757 = vld [vmem:[%s192 + $0x52] sm:$0xff]
      %v758 = vld [vmem:[%s192 + $0x5a] sm:$0xff]
      %v759 = vld [vmem:[%s192 + $0x62] sm:$0xff]
      %v760 = vld [vmem:[%s192 + $0x6a] sm:$0xff]
      %v761 = vld [vmem:[%s192 + $0x72] sm:$0xff]
      %v762 = vld [vmem:[%s192 + $0x7a] sm:$0xff]
      %v763 = vld [vmem:[%s192 + $0x82] sm:$0xff]
      %v764 = vld [vmem:[%s192 + $0x8a] sm:$0xff]
      %v765 = vld [vmem:[%s192 + $0x92] sm:$0xff]
      %v766 = vld [vmem:[%s192 + $0x9a] sm:$0xff]
      %v767 = vld [vmem:[%s192 + $0xa2] sm:$0xff]
      %v768 = vld [vmem:[%s192 + $0xaa] sm:$0xff]
      %v769 = vld [vmem:[%s192 + $0xb2] sm:$0xff]
      %v770 = vld [vmem:[%s192 + $0xba] sm:$0xff]
      %v771 = vld [vmem:[%s192 + $0xc2] sm:$0xff]
      %v772 = vld [vmem:[%s192 + $0xca] sm:$0xff]
      %v773 = vld [vmem:[%s192 + $0xd2] sm:$0xff]
      %v774 = vld [vmem:[%s192 + $0xda] sm:$0xff]
      %v775 = vld [vmem:[%s192 + $0xe2] sm:$0xff]
      %v776 = vld [vmem:[%s192 + $0xea] sm:$0xff]
      %v777 = vld [vmem:[%s192 + $0xf2] sm:$0xff]
      %v778 = vld [vmem:[%s192 + $0xfa] sm:$0xff]
      %v779 = vld [vmem:[%s192 + $0x102] sm:$0xff]
      %v780 = vld [vmem:[%s192 + $0x10a] sm:$0xff]
      %v781 = vld [vmem:[%s192 + $0x112] sm:$0xff]
      %v782 = vld [vmem:[%s192 + $0x11a] sm:$0xff]
      %s783 = scalar_lea.vmem %s1, 8
      %v784 = vld [vmem:[%s783] sm:$0xf]
      %v786 = vsel %vm273, %v747, 0
      %v789 = vsel %vm273, %v748, 0
      %v792 = vsel %vm273, %v749, 0
      %v795 = vsel %vm273, %v750, 0
      %v798 = vsel %vm273, %v751, 0
      %v801 = vsel %vm273, %v752, 0
      %v804 = vsel %vm273, %v753, 0
      %v807 = vsel %vm273, %v754, 0
      %v810 = vsel %vm273, %v755, 0
      %v813 = vsel %vm273, %v756, 0
      %v816 = vsel %vm273, %v757, 0
      %v819 = vsel %vm273, %v758, 0
      %v822 = vsel %vm273, %v759, 0
      %v825 = vsel %vm273, %v760, 0
      %v828 = vsel %vm273, %v761, 0
      %v831 = vsel %vm273, %v762, 0
      %v834 = vsel %vm273, %v763, 0
      %v837 = vsel %vm273, %v764, 0
      %v840 = vsel %vm273, %v765, 0
      %v843 = vsel %vm273, %v766, 0
      %v846 = vsel %vm273, %v767, 0
      %v849 = vsel %vm273, %v768, 0
      %v852 = vsel %vm273, %v769, 0
      %v855 = vsel %vm273, %v770, 0
      %v858 = vsel %vm273, %v771, 0
      %v861 = vsel %vm273, %v772, 0
      %v864 = vsel %vm273, %v773, 0
      %v867 = vsel %vm273, %v774, 0
      %v870 = vsel %vm273, %v775, 0
      %v873 = vsel %vm273, %v776, 0
      %v876 = vsel %vm273, %v777, 0
      %v879 = vsel %vm273, %v778, 0
      %v882 = vsel %vm273, %v779, 0
      %v885 = vsel %vm273, %v780, 0
      %v888 = vsel %vm273, %v781, 0
      %v891 = vsel %vm273, %v782, 0
      %v894 = vsel %vm382, %v784, 0
      %896 = vmatpush.msra.mxu0 0.0
      %897 = vmatpush.msra.mxu0 0.0
      %898 = vmatpush.msra.mxu0 0.0
      %899 = vmatpush.msra.mxu0 0.0
      %900 = vmatpush.msra.mxu0 0.0
      %901 = vmatpush.msra.mxu0 0.0
      %902 = vmatpush.msra.mxu0 0.0
      %903 = vmatpush.msra.mxu0 0.0
      %904 = vmatpush.msra.mxu0 0.0
      %905 = vmatpush.msra.mxu0 0.0
      %906 = vmatpush.msra.mxu0 0.0
      %907 = vmatpush.msra.mxu0 0.0
      %908 = vmatpush.msra.mxu0 0.0
      %909 = vmatpush.msra.mxu0 0.0
      %910 = vmatpush.msra.mxu0 0.0
      %911 = vmatpush.msra.mxu0 %v894
      %912 = vmatmul.f32.gmra.mxu0 %v786
      %v913 = vpop.f32.mrf.mxu0
      %v914 = vadd.f32 0.0, %v913
      %915 = vmatmul.f32.gmra.mxu0 %v789
      %v916 = vpop.f32.mrf.mxu0
      %v917 = vadd.f32 0.0, %v916
      %918 = vmatmul.f32.gmra.mxu0 %v792
      %v919 = vpop.f32.mrf.mxu0
      %v920 = vadd.f32 0.0, %v919
      %921 = vmatmul.f32.gmra.mxu0 %v795
      %v922 = vpop.f32.mrf.mxu0
      %v923 = vadd.f32 0.0, %v922
      %924 = vmatmul.f32.gmra.mxu0 %v798
      %v925 = vpop.f32.mrf.mxu0
      %v926 = vadd.f32 0.0, %v925
      %927 = vmatmul.f32.gmra.mxu0 %v801
      %v928 = vpop.f32.mrf.mxu0
      %v929 = vadd.f32 0.0, %v928
      %930 = vmatmul.f32.gmra.mxu0 %v804
      %v931 = vpop.f32.mrf.mxu0
      %v932 = vadd.f32 0.0, %v931
      %933 = vmatmul.f32.gmra.mxu0 %v807
      %v934 = vpop.f32.mrf.mxu0
      %v935 = vadd.f32 0.0, %v934
      %936 = vmatmul.f32.gmra.mxu0 %v810
      %v937 = vpop.f32.mrf.mxu0
      %v938 = vadd.f32 0.0, %v937
      %939 = vmatmul.f32.gmra.mxu0 %v813
      %v940 = vpop.f32.mrf.mxu0
      %v941 = vadd.f32 0.0, %v940
      %942 = vmatmul.f32.gmra.mxu0 %v816
      %v943 = vpop.f32.mrf.mxu0
      %v944 = vadd.f32 0.0, %v943
      %945 = vmatmul.f32.gmra.mxu0 %v819
      %v946 = vpop.f32.mrf.mxu0
      %v947 = vadd.f32 0.0, %v946
      %948 = vmatmul.f32.gmra.mxu0 %v822
      %v949 = vpop.f32.mrf.mxu0
      %v950 = vadd.f32 0.0, %v949
      %951 = vmatmul.f32.gmra.mxu0 %v825
      %v952 = vpop.f32.mrf.mxu0
      %v953 = vadd.f32 0.0, %v952
      %954 = vmatmul.f32.gmra.mxu0 %v828
      %v955 = vpop.f32.mrf.mxu0
      %v956 = vadd.f32 0.0, %v955
      %957 = vmatmul.f32.gmra.mxu0 %v831
      %v958 = vpop.f32.mrf.mxu0
      %v959 = vadd.f32 0.0, %v958
      %960 = vmatmul.f32.gmra.mxu0 %v834
      %v961 = vpop.f32.mrf.mxu0
      %v962 = vadd.f32 0.0, %v961
      %963 = vmatmul.f32.gmra.mxu0 %v837
      %v964 = vpop.f32.mrf.mxu0
      %v965 = vadd.f32 0.0, %v964
      %966 = vmatmul.f32.gmra.mxu0 %v840
      %v967 = vpop.f32.mrf.mxu0
      %v968 = vadd.f32 0.0, %v967
      %969 = vmatmul.f32.gmra.mxu0 %v843
      %v970 = vpop.f32.mrf.mxu0
      %v971 = vadd.f32 0.0, %v970
      %972 = vmatmul.f32.gmra.mxu0 %v846
      %v973 = vpop.f32.mrf.mxu0
      %v974 = vadd.f32 0.0, %v973
      %975 = vmatmul.f32.gmra.mxu0 %v849
      %v976 = vpop.f32.mrf.mxu0
      %v977 = vadd.f32 0.0, %v976
      %978 = vmatmul.f32.gmra.mxu0 %v852
      %v979 = vpop.f32.mrf.mxu0
      %v980 = vadd.f32 0.0, %v979
      %981 = vmatmul.f32.gmra.mxu0 %v855
      %v982 = vpop.f32.mrf.mxu0
      %v983 = vadd.f32 0.0, %v982
      %984 = vmatmul.f32.gmra.mxu0 %v858
      %v985 = vpop.f32.mrf.mxu0
      %v986 = vadd.f32 0.0, %v985
      %987 = vmatmul.f32.gmra.mxu0 %v861
      %v988 = vpop.f32.mrf.mxu0
      %v989 = vadd.f32 0.0, %v988
      %990 = vmatmul.f32.gmra.mxu0 %v864
      %v991 = vpop.f32.mrf.mxu0
      %v992 = vadd.f32 0.0, %v991
      %993 = vmatmul.f32.gmra.mxu0 %v867
      %v994 = vpop.f32.mrf.mxu0
      %v995 = vadd.f32 0.0, %v994
      %996 = vmatmul.f32.gmra.mxu0 %v870
      %v997 = vpop.f32.mrf.mxu0
      %v998 = vadd.f32 0.0, %v997
      %999 = vmatmul.f32.gmra.mxu0 %v873
      %v1000 = vpop.f32.mrf.mxu0
      %v1001 = vadd.f32 0.0, %v1000
      %1002 = vmatmul.f32.gmra.mxu0 %v876
      %v1003 = vpop.f32.mrf.mxu0
      %v1004 = vadd.f32 0.0, %v1003
      %1005 = vmatmul.f32.gmra.mxu0 %v879
      %v1006 = vpop.f32.mrf.mxu0
      %v1007 = vadd.f32 0.0, %v1006
      %1008 = vmatmul.f32.gmra.mxu0 %v882
      %v1009 = vpop.f32.mrf.mxu0
      %v1010 = vadd.f32 0.0, %v1009
      %1011 = vmatmul.f32.gmra.mxu0 %v885
      %v1012 = vpop.f32.mrf.mxu0
      %v1013 = vadd.f32 0.0, %v1012
      %1014 = vmatmul.f32.gmra.mxu0 %v888
      %v1015 = vpop.f32.mrf.mxu0
      %v1016 = vadd.f32 0.0, %v1015
      %1017 = vmatmul.f32.gmra.mxu0 %v891
      %v1018 = vpop.f32.mrf.mxu0
      %v1019 = vadd.f32 0.0, %v1018
      %1020 = vdwg.mxu0
      %v1021 = vadd.f32 %v640, %v914
      %v1022 = vadd.f32 %v643, %v917
      %v1023 = vadd.f32 %v646, %v920
      %v1024 = vadd.f32 %v649, %v923
      %v1025 = vadd.f32 %v652, %v926
      %v1026 = vadd.f32 %v655, %v929
      %v1027 = vadd.f32 %v658, %v932
      %v1028 = vadd.f32 %v661, %v935
      %v1029 = vadd.f32 %v664, %v938
      %v1030 = vadd.f32 %v667, %v941
      %v1031 = vadd.f32 %v670, %v944
      %v1032 = vadd.f32 %v673, %v947
      %v1033 = vadd.f32 %v676, %v950
      %v1034 = vadd.f32 %v679, %v953
      %v1035 = vadd.f32 %v682, %v956
      %v1036 = vadd.f32 %v685, %v959
      %v1037 = vadd.f32 %v688, %v962
      %v1038 = vadd.f32 %v691, %v965
      %v1039 = vadd.f32 %v694, %v968
      %v1040 = vadd.f32 %v697, %v971
      %v1041 = vadd.f32 %v700, %v974
      %v1042 = vadd.f32 %v703, %v977
      %v1043 = vadd.f32 %v706, %v980
      %v1044 = vadd.f32 %v709, %v983
      %v1045 = vadd.f32 %v712, %v986
      %v1046 = vadd.f32 %v715, %v989
      %v1047 = vadd.f32 %v718, %v992
      %v1048 = vadd.f32 %v721, %v995
      %v1049 = vadd.f32 %v724, %v998
      %v1050 = vadd.f32 %v727, %v1001
      %v1051 = vadd.f32 %v730, %v1004
      %v1052 = vadd.f32 %v733, %v1007
      %v1053 = vadd.f32 %v736, %v1010
      %v1054 = vadd.f32 %v739, %v1013
      %v1055 = vadd.f32 %v742, %v1016
      %v1056 = vadd.f32 %v745, %v1019
      %v1057 = vld [vmem:[%s192 + $0x12] sm:$0xff]
      %v1058 = vld [vmem:[%s192 + $0x1a] sm:$0xff]
      %v1059 = vld [vmem:[%s192 + $0x22] sm:$0xff]
      %v1060 = vld [vmem:[%s192 + $0x2a] sm:$0xff]
      %v1061 = vld [vmem:[%s192 + $0x32] sm:$0xff]
      %v1062 = vld [vmem:[%s192 + $0x3a] sm:$0xff]
      %v1063 = vld [vmem:[%s192 + $0x42] sm:$0xff]
      %v1064 = vld [vmem:[%s192 + $0x4a] sm:$0xff]
      %v1065 = vld [vmem:[%s192 + $0x52] sm:$0xff]
      %v1066 = vld [vmem:[%s192 + $0x5a] sm:$0xff]
      %v1067 = vld [vmem:[%s192 + $0x62] sm:$0xff]
      %v1068 = vld [vmem:[%s192 + $0x6a] sm:$0xff]
      %v1069 = vld [vmem:[%s192 + $0x72] sm:$0xff]
      %v1070 = vld [vmem:[%s192 + $0x7a] sm:$0xff]
      %v1071 = vld [vmem:[%s192 + $0x82] sm:$0xff]
      %v1072 = vld [vmem:[%s192 + $0x8a] sm:$0xff]
      %v1073 = vld [vmem:[%s192 + $0x92] sm:$0xff]
      %v1074 = vld [vmem:[%s192 + $0x9a] sm:$0xff]
      %v1075 = vld [vmem:[%s192 + $0xa2] sm:$0xff]
      %v1076 = vld [vmem:[%s192 + $0xaa] sm:$0xff]
      %v1077 = vld [vmem:[%s192 + $0xb2] sm:$0xff]
      %v1078 = vld [vmem:[%s192 + $0xba] sm:$0xff]
      %v1079 = vld [vmem:[%s192 + $0xc2] sm:$0xff]
      %v1080 = vld [vmem:[%s192 + $0xca] sm:$0xff]
      %v1081 = vld [vmem:[%s192 + $0xd2] sm:$0xff]
      %v1082 = vld [vmem:[%s192 + $0xda] sm:$0xff]
      %v1083 = vld [vmem:[%s192 + $0xe2] sm:$0xff]
      %v1084 = vld [vmem:[%s192 + $0xea] sm:$0xff]
      %v1085 = vld [vmem:[%s192 + $0xf2] sm:$0xff]
      %v1086 = vld [vmem:[%s192 + $0xfa] sm:$0xff]
      %v1087 = vld [vmem:[%s192 + $0x102] sm:$0xff]
      %v1088 = vld [vmem:[%s192 + $0x10a] sm:$0xff]
      %v1089 = vld [vmem:[%s192 + $0x112] sm:$0xff]
      %v1090 = vld [vmem:[%s192 + $0x11a] sm:$0xff]
      %v1091 = vld [vmem:[%s192 + $0x122] sm:$0xff]
      %v1092 = vld [vmem:[%s192 + $0x12a] sm:$0xff]
      %s1093 = scalar_lea.vmem %s1, 12
      %v1094 = vld [vmem:[%s1093] sm:$0xf]
      %v1096 = vsel %vm273, %v1057, 0
      %v1099 = vsel %vm273, %v1058, 0
      %v1102 = vsel %vm273, %v1059, 0
      %v1105 = vsel %vm273, %v1060, 0
      %v1108 = vsel %vm273, %v1061, 0
      %v1111 = vsel %vm273, %v1062, 0
      %v1114 = vsel %vm273, %v1063, 0
      %v1117 = vsel %vm273, %v1064, 0
      %v1120 = vsel %vm273, %v1065, 0
      %v1123 = vsel %vm273, %v1066, 0
      %v1126 = vsel %vm273, %v1067, 0
      %v1129 = vsel %vm273, %v1068, 0
      %v1132 = vsel %vm273, %v1069, 0
      %v1135 = vsel %vm273, %v1070, 0
      %v1138 = vsel %vm273, %v1071, 0
      %v1141 = vsel %vm273, %v1072, 0
      %v1144 = vsel %vm273, %v1073, 0
      %v1147 = vsel %vm273, %v1074, 0
      %v1150 = vsel %vm273, %v1075, 0
      %v1153 = vsel %vm273, %v1076, 0
      %v1156 = vsel %vm273, %v1077, 0
      %v1159 = vsel %vm273, %v1078, 0
      %v1162 = vsel %vm273, %v1079, 0
      %v1165 = vsel %vm273, %v1080, 0
      %v1168 = vsel %vm273, %v1081, 0
      %v1171 = vsel %vm273, %v1082, 0
      %v1174 = vsel %vm273, %v1083, 0
      %v1177 = vsel %vm273, %v1084, 0
      %v1180 = vsel %vm273, %v1085, 0
      %v1183 = vsel %vm273, %v1086, 0
      %v1186 = vsel %vm273, %v1087, 0
      %v1189 = vsel %vm273, %v1088, 0
      %v1192 = vsel %vm273, %v1089, 0
      %v1195 = vsel %vm273, %v1090, 0
      %v1198 = vsel %vm273, %v1091, 0
      %v1201 = vsel %vm273, %v1092, 0
      %v1204 = vsel %vm382, %v1094, 0
      %1206 = vmatpush.msra.mxu0 0.0
      %1207 = vmatpush.msra.mxu0 0.0
      %1208 = vmatpush.msra.mxu0 0.0
      %1209 = vmatpush.msra.mxu0 0.0
      %1210 = vmatpush.msra.mxu0 0.0
      %1211 = vmatpush.msra.mxu0 0.0
      %1212 = vmatpush.msra.mxu0 0.0
      %1213 = vmatpush.msra.mxu0 0.0
      %1214 = vmatpush.msra.mxu0 0.0
      %1215 = vmatpush.msra.mxu0 0.0
      %1216 = vmatpush.msra.mxu0 0.0
      %1217 = vmatpush.msra.mxu0 0.0
      %1218 = vmatpush.msra.mxu0 0.0
      %1219 = vmatpush.msra.mxu0 0.0
      %1220 = vmatpush.msra.mxu0 0.0
      %1221 = vmatpush.msra.mxu0 %v1204
      %1222 = vmatmul.f32.gmra.mxu0 %v1096
      %v1223 = vpop.f32.mrf.mxu0
      %v1224 = vadd.f32 0.0, %v1223
      %1225 = vmatmul.f32.gmra.mxu0 %v1099
      %v1226 = vpop.f32.mrf.mxu0
      %v1227 = vadd.f32 0.0, %v1226
      %1228 = vmatmul.f32.gmra.mxu0 %v1102
      %v1229 = vpop.f32.mrf.mxu0
      %v1230 = vadd.f32 0.0, %v1229
      %1231 = vmatmul.f32.gmra.mxu0 %v1105
      %v1232 = vpop.f32.mrf.mxu0
      %v1233 = vadd.f32 0.0, %v1232
      %1234 = vmatmul.f32.gmra.mxu0 %v1108
      %v1235 = vpop.f32.mrf.mxu0
      %v1236 = vadd.f32 0.0, %v1235
      %1237 = vmatmul.f32.gmra.mxu0 %v1111
      %v1238 = vpop.f32.mrf.mxu0
      %v1239 = vadd.f32 0.0, %v1238
      %1240 = vmatmul.f32.gmra.mxu0 %v1114
      %v1241 = vpop.f32.mrf.mxu0
      %v1242 = vadd.f32 0.0, %v1241
      %1243 = vmatmul.f32.gmra.mxu0 %v1117
      %v1244 = vpop.f32.mrf.mxu0
      %v1245 = vadd.f32 0.0, %v1244
      %1246 = vmatmul.f32.gmra.mxu0 %v1120
      %v1247 = vpop.f32.mrf.mxu0
      %v1248 = vadd.f32 0.0, %v1247
      %1249 = vmatmul.f32.gmra.mxu0 %v1123
      %v1250 = vpop.f32.mrf.mxu0
      %v1251 = vadd.f32 0.0, %v1250
      %1252 = vmatmul.f32.gmra.mxu0 %v1126
      %v1253 = vpop.f32.mrf.mxu0
      %v1254 = vadd.f32 0.0, %v1253
      %1255 = vmatmul.f32.gmra.mxu0 %v1129
      %v1256 = vpop.f32.mrf.mxu0
      %v1257 = vadd.f32 0.0, %v1256
      %1258 = vmatmul.f32.gmra.mxu0 %v1132
      %v1259 = vpop.f32.mrf.mxu0
      %v1260 = vadd.f32 0.0, %v1259
      %1261 = vmatmul.f32.gmra.mxu0 %v1135
      %v1262 = vpop.f32.mrf.mxu0
      %v1263 = vadd.f32 0.0, %v1262
      %1264 = vmatmul.f32.gmra.mxu0 %v1138
      %v1265 = vpop.f32.mrf.mxu0
      %v1266 = vadd.f32 0.0, %v1265
      %1267 = vmatmul.f32.gmra.mxu0 %v1141
      %v1268 = vpop.f32.mrf.mxu0
      %v1269 = vadd.f32 0.0, %v1268
      %1270 = vmatmul.f32.gmra.mxu0 %v1144
      %v1271 = vpop.f32.mrf.mxu0
      %v1272 = vadd.f32 0.0, %v1271
      %1273 = vmatmul.f32.gmra.mxu0 %v1147
      %v1274 = vpop.f32.mrf.mxu0
      %v1275 = vadd.f32 0.0, %v1274
      %1276 = vmatmul.f32.gmra.mxu0 %v1150
      %v1277 = vpop.f32.mrf.mxu0
      %v1278 = vadd.f32 0.0, %v1277
      %1279 = vmatmul.f32.gmra.mxu0 %v1153
      %v1280 = vpop.f32.mrf.mxu0
      %v1281 = vadd.f32 0.0, %v1280
      %1282 = vmatmul.f32.gmra.mxu0 %v1156
      %v1283 = vpop.f32.mrf.mxu0
      %v1284 = vadd.f32 0.0, %v1283
      %1285 = vmatmul.f32.gmra.mxu0 %v1159
      %v1286 = vpop.f32.mrf.mxu0
      %v1287 = vadd.f32 0.0, %v1286
      %1288 = vmatmul.f32.gmra.mxu0 %v1162
      %v1289 = vpop.f32.mrf.mxu0
      %v1290 = vadd.f32 0.0, %v1289
      %1291 = vmatmul.f32.gmra.mxu0 %v1165
      %v1292 = vpop.f32.mrf.mxu0
      %v1293 = vadd.f32 0.0, %v1292
      %1294 = vmatmul.f32.gmra.mxu0 %v1168
      %v1295 = vpop.f32.mrf.mxu0
      %v1296 = vadd.f32 0.0, %v1295
      %1297 = vmatmul.f32.gmra.mxu0 %v1171
      %v1298 = vpop.f32.mrf.mxu0
      %v1299 = vadd.f32 0.0, %v1298
      %1300 = vmatmul.f32.gmra.mxu0 %v1174
      %v1301 = vpop.f32.mrf.mxu0
      %v1302 = vadd.f32 0.0, %v1301
      %1303 = vmatmul.f32.gmra.mxu0 %v1177
      %v1304 = vpop.f32.mrf.mxu0
      %v1305 = vadd.f32 0.0, %v1304
      %1306 = vmatmul.f32.gmra.mxu0 %v1180
      %v1307 = vpop.f32.mrf.mxu0
      %v1308 = vadd.f32 0.0, %v1307
      %1309 = vmatmul.f32.gmra.mxu0 %v1183
      %v1310 = vpop.f32.mrf.mxu0
      %v1311 = vadd.f32 0.0, %v1310
      %1312 = vmatmul.f32.gmra.mxu0 %v1186
      %v1313 = vpop.f32.mrf.mxu0
      %v1314 = vadd.f32 0.0, %v1313
      %1315 = vmatmul.f32.gmra.mxu0 %v1189
      %v1316 = vpop.f32.mrf.mxu0
      %v1317 = vadd.f32 0.0, %v1316
      %1318 = vmatmul.f32.gmra.mxu0 %v1192
      %v1319 = vpop.f32.mrf.mxu0
      %v1320 = vadd.f32 0.0, %v1319
      %1321 = vmatmul.f32.gmra.mxu0 %v1195
      %v1322 = vpop.f32.mrf.mxu0
      %v1323 = vadd.f32 0.0, %v1322
      %1324 = vmatmul.f32.gmra.mxu0 %v1198
      %v1325 = vpop.f32.mrf.mxu0
      %v1326 = vadd.f32 0.0, %v1325
      %1327 = vmatmul.f32.gmra.mxu0 %v1201
      %v1328 = vpop.f32.mrf.mxu0
      %v1329 = vadd.f32 0.0, %v1328
      %1330 = vdwg.mxu0
      %v1331 = vadd.f32 %v1021, %v1224
      %v1332 = vadd.f32 %v1022, %v1227
      %v1333 = vadd.f32 %v1023, %v1230
      %v1334 = vadd.f32 %v1024, %v1233
      %v1335 = vadd.f32 %v1025, %v1236
      %v1336 = vadd.f32 %v1026, %v1239
      %v1337 = vadd.f32 %v1027, %v1242
      %v1338 = vadd.f32 %v1028, %v1245
      %v1339 = vadd.f32 %v1029, %v1248
      %v1340 = vadd.f32 %v1030, %v1251
      %v1341 = vadd.f32 %v1031, %v1254
      %v1342 = vadd.f32 %v1032, %v1257
      %v1343 = vadd.f32 %v1033, %v1260
      %v1344 = vadd.f32 %v1034, %v1263
      %v1345 = vadd.f32 %v1035, %v1266
      %v1346 = vadd.f32 %v1036, %v1269
      %v1347 = vadd.f32 %v1037, %v1272
      %v1348 = vadd.f32 %v1038, %v1275
      %v1349 = vadd.f32 %v1039, %v1278
      %v1350 = vadd.f32 %v1040, %v1281
      %v1351 = vadd.f32 %v1041, %v1284
      %v1352 = vadd.f32 %v1042, %v1287
      %v1353 = vadd.f32 %v1043, %v1290
      %v1354 = vadd.f32 %v1044, %v1293
      %v1355 = vadd.f32 %v1045, %v1296
      %v1356 = vadd.f32 %v1046, %v1299
      %v1357 = vadd.f32 %v1047, %v1302
      %v1358 = vadd.f32 %v1048, %v1305
      %v1359 = vadd.f32 %v1049, %v1308
      %v1360 = vadd.f32 %v1050, %v1311
      %v1361 = vadd.f32 %v1051, %v1314
      %v1362 = vadd.f32 %v1052, %v1317
      %v1363 = vadd.f32 %v1053, %v1320
      %v1364 = vadd.f32 %v1054, %v1323
      %v1365 = vadd.f32 %v1055, %v1326
      %v1366 = vadd.f32 %v1056, %v1329
      %v1367 = vld [vmem:[%s192 + $0x13] sm:$0xff]
      %v1368 = vld [vmem:[%s192 + $0x1b] sm:$0xff]
      %v1369 = vld [vmem:[%s192 + $0x23] sm:$0xff]
      %v1370 = vld [vmem:[%s192 + $0x2b] sm:$0xff]
      %v1371 = vld [vmem:[%s192 + $0x33] sm:$0xff]
      %v1372 = vld [vmem:[%s192 + $0x3b] sm:$0xff]
      %v1373 = vld [vmem:[%s192 + $0x43] sm:$0xff]
      %v1374 = vld [vmem:[%s192 + $0x4b] sm:$0xff]
      %v1375 = vld [vmem:[%s192 + $0x53] sm:$0xff]
      %v1376 = vld [vmem:[%s192 + $0x5b] sm:$0xff]
      %v1377 = vld [vmem:[%s192 + $0x63] sm:$0xff]
      %v1378 = vld [vmem:[%s192 + $0x6b] sm:$0xff]
      %v1379 = vld [vmem:[%s192 + $0x73] sm:$0xff]
      %v1380 = vld [vmem:[%s192 + $0x7b] sm:$0xff]
      %v1381 = vld [vmem:[%s192 + $0x83] sm:$0xff]
      %v1382 = vld [vmem:[%s192 + $0x8b] sm:$0xff]
      %v1383 = vld [vmem:[%s192 + $0x93] sm:$0xff]
      %v1384 = vld [vmem:[%s192 + $0x9b] sm:$0xff]
      %v1385 = vld [vmem:[%s192 + $0xa3] sm:$0xff]
      %v1386 = vld [vmem:[%s192 + $0xab] sm:$0xff]
      %v1387 = vld [vmem:[%s192 + $0xb3] sm:$0xff]
      %v1388 = vld [vmem:[%s192 + $0xbb] sm:$0xff]
      %v1389 = vld [vmem:[%s192 + $0xc3] sm:$0xff]
      %v1390 = vld [vmem:[%s192 + $0xcb] sm:$0xff]
      %v1391 = vld [vmem:[%s192 + $0xd3] sm:$0xff]
      %v1392 = vld [vmem:[%s192 + $0xdb] sm:$0xff]
      %v1393 = vld [vmem:[%s192 + $0xe3] sm:$0xff]
      %v1394 = vld [vmem:[%s192 + $0xeb] sm:$0xff]
      %v1395 = vld [vmem:[%s192 + $0xf3] sm:$0xff]
      %v1396 = vld [vmem:[%s192 + $0xfb] sm:$0xff]
      %v1397 = vld [vmem:[%s192 + $0x103] sm:$0xff]
      %v1398 = vld [vmem:[%s192 + $0x10b] sm:$0xff]
      %v1399 = vld [vmem:[%s192 + $0x113] sm:$0xff]
      %v1400 = vld [vmem:[%s192 + $0x11b] sm:$0xff]
      %v1401 = vld [vmem:[%s192 + $0x123] sm:$0xff]
      %v1402 = vld [vmem:[%s192 + $0x12b] sm:$0xff]
      %s1403 = scalar_lea.vmem %s1, 16
      %v1404 = vld [vmem:[%s1403] sm:$0xf]
      %v1406 = vsel %vm273, %v1367, 0
      %v1409 = vsel %vm273, %v1368, 0
      %v1412 = vsel %vm273, %v1369, 0
      %v1415 = vsel %vm273, %v1370, 0
      %v1418 = vsel %vm273, %v1371, 0
      %v1421 = vsel %vm273, %v1372, 0
      %v1424 = vsel %vm273, %v1373, 0
      %v1427 = vsel %vm273, %v1374, 0
      %v1430 = vsel %vm273, %v1375, 0
      %v1433 = vsel %vm273, %v1376, 0
      %v1436 = vsel %vm273, %v1377, 0
      %v1439 = vsel %vm273, %v1378, 0
      %v1442 = vsel %vm273, %v1379, 0
      %v1445 = vsel %vm273, %v1380, 0
      %v1448 = vsel %vm273, %v1381, 0
      %v1451 = vsel %vm273, %v1382, 0
      %v1454 = vsel %vm273, %v1383, 0
      %v1457 = vsel %vm273, %v1384, 0
      %v1460 = vsel %vm273, %v1385, 0
      %v1463 = vsel %vm273, %v1386, 0
      %v1466 = vsel %vm273, %v1387, 0
      %v1469 = vsel %vm273, %v1388, 0
      %v1472 = vsel %vm273, %v1389, 0
      %v1475 = vsel %vm273, %v1390, 0
      %v1478 = vsel %vm273, %v1391, 0
      %v1481 = vsel %vm273, %v1392, 0
      %v1484 = vsel %vm273, %v1393, 0
      %v1487 = vsel %vm273, %v1394, 0
      %v1490 = vsel %vm273, %v1395, 0
      %v1493 = vsel %vm273, %v1396, 0
      %v1496 = vsel %vm273, %v1397, 0
      %v1499 = vsel %vm273, %v1398, 0
      %v1502 = vsel %vm273, %v1399, 0
      %v1505 = vsel %vm273, %v1400, 0
      %v1508 = vsel %vm273, %v1401, 0
      %v1511 = vsel %vm273, %v1402, 0
      %v1514 = vsel %vm382, %v1404, 0
      %1516 = vmatpush.msra.mxu0 0.0
      %1517 = vmatpush.msra.mxu0 0.0
      %1518 = vmatpush.msra.mxu0 0.0
      %1519 = vmatpush.msra.mxu0 0.0
      %1520 = vmatpush.msra.mxu0 0.0
      %1521 = vmatpush.msra.mxu0 0.0
      %1522 = vmatpush.msra.mxu0 0.0
      %1523 = vmatpush.msra.mxu0 0.0
      %1524 = vmatpush.msra.mxu0 0.0
      %1525 = vmatpush.msra.mxu0 0.0
      %1526 = vmatpush.msra.mxu0 0.0
      %1527 = vmatpush.msra.mxu0 0.0
      %1528 = vmatpush.msra.mxu0 0.0
      %1529 = vmatpush.msra.mxu0 0.0
      %1530 = vmatpush.msra.mxu0 0.0
      %1531 = vmatpush.msra.mxu0 %v1514
      %1532 = vmatmul.f32.gmra.mxu0 %v1406
      %v1533 = vpop.f32.mrf.mxu0
      %v1534 = vadd.f32 0.0, %v1533
      %1535 = vmatmul.f32.gmra.mxu0 %v1409
      %v1536 = vpop.f32.mrf.mxu0
      %v1537 = vadd.f32 0.0, %v1536
      %1538 = vmatmul.f32.gmra.mxu0 %v1412
      %v1539 = vpop.f32.mrf.mxu0
      %v1540 = vadd.f32 0.0, %v1539
      %1541 = vmatmul.f32.gmra.mxu0 %v1415
      %v1542 = vpop.f32.mrf.mxu0
      %v1543 = vadd.f32 0.0, %v1542
      %1544 = vmatmul.f32.gmra.mxu0 %v1418
      %v1545 = vpop.f32.mrf.mxu0
      %v1546 = vadd.f32 0.0, %v1545
      %1547 = vmatmul.f32.gmra.mxu0 %v1421
      %v1548 = vpop.f32.mrf.mxu0
      %v1549 = vadd.f32 0.0, %v1548
      %1550 = vmatmul.f32.gmra.mxu0 %v1424
      %v1551 = vpop.f32.mrf.mxu0
      %v1552 = vadd.f32 0.0, %v1551
      %1553 = vmatmul.f32.gmra.mxu0 %v1427
      %v1554 = vpop.f32.mrf.mxu0
      %v1555 = vadd.f32 0.0, %v1554
      %1556 = vmatmul.f32.gmra.mxu0 %v1430
      %v1557 = vpop.f32.mrf.mxu0
      %v1558 = vadd.f32 0.0, %v1557
      %1559 = vmatmul.f32.gmra.mxu0 %v1433
      %v1560 = vpop.f32.mrf.mxu0
      %v1561 = vadd.f32 0.0, %v1560
      %1562 = vmatmul.f32.gmra.mxu0 %v1436
      %v1563 = vpop.f32.mrf.mxu0
      %v1564 = vadd.f32 0.0, %v1563
      %1565 = vmatmul.f32.gmra.mxu0 %v1439
      %v1566 = vpop.f32.mrf.mxu0
      %v1567 = vadd.f32 0.0, %v1566
      %1568 = vmatmul.f32.gmra.mxu0 %v1442
      %v1569 = vpop.f32.mrf.mxu0
      %v1570 = vadd.f32 0.0, %v1569
      %1571 = vmatmul.f32.gmra.mxu0 %v1445
      %v1572 = vpop.f32.mrf.mxu0
      %v1573 = vadd.f32 0.0, %v1572
      %1574 = vmatmul.f32.gmra.mxu0 %v1448
      %v1575 = vpop.f32.mrf.mxu0
      %v1576 = vadd.f32 0.0, %v1575
      %1577 = vmatmul.f32.gmra.mxu0 %v1451
      %v1578 = vpop.f32.mrf.mxu0
      %v1579 = vadd.f32 0.0, %v1578
      %1580 = vmatmul.f32.gmra.mxu0 %v1454
      %v1581 = vpop.f32.mrf.mxu0
      %v1582 = vadd.f32 0.0, %v1581
      %1583 = vmatmul.f32.gmra.mxu0 %v1457
      %v1584 = vpop.f32.mrf.mxu0
      %v1585 = vadd.f32 0.0, %v1584
      %1586 = vmatmul.f32.gmra.mxu0 %v1460
      %v1587 = vpop.f32.mrf.mxu0
      %v1588 = vadd.f32 0.0, %v1587
      %1589 = vmatmul.f32.gmra.mxu0 %v1463
      %v1590 = vpop.f32.mrf.mxu0
      %v1591 = vadd.f32 0.0, %v1590
      %1592 = vmatmul.f32.gmra.mxu0 %v1466
      %v1593 = vpop.f32.mrf.mxu0
      %v1594 = vadd.f32 0.0, %v1593
      %1595 = vmatmul.f32.gmra.mxu0 %v1469
      %v1596 = vpop.f32.mrf.mxu0
      %v1597 = vadd.f32 0.0, %v1596
      %1598 = vmatmul.f32.gmra.mxu0 %v1472
      %v1599 = vpop.f32.mrf.mxu0
      %v1600 = vadd.f32 0.0, %v1599
      %1601 = vmatmul.f32.gmra.mxu0 %v1475
      %v1602 = vpop.f32.mrf.mxu0
      %v1603 = vadd.f32 0.0, %v1602
      %1604 = vmatmul.f32.gmra.mxu0 %v1478
      %v1605 = vpop.f32.mrf.mxu0
      %v1606 = vadd.f32 0.0, %v1605
      %1607 = vmatmul.f32.gmra.mxu0 %v1481
      %v1608 = vpop.f32.mrf.mxu0
      %v1609 = vadd.f32 0.0, %v1608
      %1610 = vmatmul.f32.gmra.mxu0 %v1484
      %v1611 = vpop.f32.mrf.mxu0
      %v1612 = vadd.f32 0.0, %v1611
      %1613 = vmatmul.f32.gmra.mxu0 %v1487
      %v1614 = vpop.f32.mrf.mxu0
      %v1615 = vadd.f32 0.0, %v1614
      %1616 = vmatmul.f32.gmra.mxu0 %v1490
      %v1617 = vpop.f32.mrf.mxu0
      %v1618 = vadd.f32 0.0, %v1617
      %1619 = vmatmul.f32.gmra.mxu0 %v1493
      %v1620 = vpop.f32.mrf.mxu0
      %v1621 = vadd.f32 0.0, %v1620
      %1622 = vmatmul.f32.gmra.mxu0 %v1496
      %v1623 = vpop.f32.mrf.mxu0
      %v1624 = vadd.f32 0.0, %v1623
      %1625 = vmatmul.f32.gmra.mxu0 %v1499
      %v1626 = vpop.f32.mrf.mxu0
      %v1627 = vadd.f32 0.0, %v1626
      %1628 = vmatmul.f32.gmra.mxu0 %v1502
      %v1629 = vpop.f32.mrf.mxu0
      %v1630 = vadd.f32 0.0, %v1629
      %1631 = vmatmul.f32.gmra.mxu0 %v1505
      %v1632 = vpop.f32.mrf.mxu0
      %v1633 = vadd.f32 0.0, %v1632
      %1634 = vmatmul.f32.gmra.mxu0 %v1508
      %v1635 = vpop.f32.mrf.mxu0
      %v1636 = vadd.f32 0.0, %v1635
      %1637 = vmatmul.f32.gmra.mxu0 %v1511
      %v1638 = vpop.f32.mrf.mxu0
      %v1639 = vadd.f32 0.0, %v1638
      %1640 = vdwg.mxu0
      %v1641 = vadd.f32 %v1331, %v1534
      %v1642 = vadd.f32 %v1332, %v1537
      %v1643 = vadd.f32 %v1333, %v1540
      %v1644 = vadd.f32 %v1334, %v1543
      %v1645 = vadd.f32 %v1335, %v1546
      %v1646 = vadd.f32 %v1336, %v1549
      %v1647 = vadd.f32 %v1337, %v1552
      %v1648 = vadd.f32 %v1338, %v1555
      %v1649 = vadd.f32 %v1339, %v1558
      %v1650 = vadd.f32 %v1340, %v1561
      %v1651 = vadd.f32 %v1341, %v1564
      %v1652 = vadd.f32 %v1342, %v1567
      %v1653 = vadd.f32 %v1343, %v1570
      %v1654 = vadd.f32 %v1344, %v1573
      %v1655 = vadd.f32 %v1345, %v1576
      %v1656 = vadd.f32 %v1346, %v1579
      %v1657 = vadd.f32 %v1347, %v1582
      %v1658 = vadd.f32 %v1348, %v1585
      %v1659 = vadd.f32 %v1349, %v1588
      %v1660 = vadd.f32 %v1350, %v1591
      %v1661 = vadd.f32 %v1351, %v1594
      %v1662 = vadd.f32 %v1352, %v1597
      %v1663 = vadd.f32 %v1353, %v1600
      %v1664 = vadd.f32 %v1354, %v1603
      %v1665 = vadd.f32 %v1355, %v1606
      %v1666 = vadd.f32 %v1356, %v1609
      %v1667 = vadd.f32 %v1357, %v1612
      %v1668 = vadd.f32 %v1358, %v1615
      %v1669 = vadd.f32 %v1359, %v1618
      %v1670 = vadd.f32 %v1360, %v1621
      %v1671 = vadd.f32 %v1361, %v1624
      %v1672 = vadd.f32 %v1362, %v1627
      %v1673 = vadd.f32 %v1363, %v1630
      %v1674 = vadd.f32 %v1364, %v1633
      %v1675 = vadd.f32 %v1365, %v1636
      %v1676 = vadd.f32 %v1366, %v1639
      %v1677 = vld [vmem:[%s192 + $0x14] sm:$0xff]
      %v1678 = vld [vmem:[%s192 + $0x1c] sm:$0xff]
      %v1679 = vld [vmem:[%s192 + $0x24] sm:$0xff]
      %v1680 = vld [vmem:[%s192 + $0x2c] sm:$0xff]
      %v1681 = vld [vmem:[%s192 + $0x34] sm:$0xff]
      %v1682 = vld [vmem:[%s192 + $0x3c] sm:$0xff]
      %v1683 = vld [vmem:[%s192 + $0x44] sm:$0xff]
      %v1684 = vld [vmem:[%s192 + $0x4c] sm:$0xff]
      %v1685 = vld [vmem:[%s192 + $0x54] sm:$0xff]
      %v1686 = vld [vmem:[%s192 + $0x5c] sm:$0xff]
      %v1687 = vld [vmem:[%s192 + $0x64] sm:$0xff]
      %v1688 = vld [vmem:[%s192 + $0x6c] sm:$0xff]
      %v1689 = vld [vmem:[%s192 + $0x74] sm:$0xff]
      %v1690 = vld [vmem:[%s192 + $0x7c] sm:$0xff]
      %v1691 = vld [vmem:[%s192 + $0x84] sm:$0xff]
      %v1692 = vld [vmem:[%s192 + $0x8c] sm:$0xff]
      %v1693 = vld [vmem:[%s192 + $0x94] sm:$0xff]
      %v1694 = vld [vmem:[%s192 + $0x9c] sm:$0xff]
      %v1695 = vld [vmem:[%s192 + $0xa4] sm:$0xff]
      %v1696 = vld [vmem:[%s192 + $0xac] sm:$0xff]
      %v1697 = vld [vmem:[%s192 + $0xb4] sm:$0xff]
      %v1698 = vld [vmem:[%s192 + $0xbc] sm:$0xff]
      %v1699 = vld [vmem:[%s192 + $0xc4] sm:$0xff]
      %v1700 = vld [vmem:[%s192 + $0xcc] sm:$0xff]
      %v1701 = vld [vmem:[%s192 + $0xd4] sm:$0xff]
      %v1702 = vld [vmem:[%s192 + $0xdc] sm:$0xff]
      %v1703 = vld [vmem:[%s192 + $0xe4] sm:$0xff]
      %v1704 = vld [vmem:[%s192 + $0xec] sm:$0xff]
      %v1705 = vld [vmem:[%s192 + $0xf4] sm:$0xff]
      %v1706 = vld [vmem:[%s192 + $0xfc] sm:$0xff]
      %v1707 = vld [vmem:[%s192 + $0x104] sm:$0xff]
      %v1708 = vld [vmem:[%s192 + $0x10c] sm:$0xff]
      %v1709 = vld [vmem:[%s192 + $0x114] sm:$0xff]
      %v1710 = vld [vmem:[%s192 + $0x11c] sm:$0xff]
      %v1711 = vld [vmem:[%s192 + $0x124] sm:$0xff]
      %v1712 = vld [vmem:[%s192 + $0x12c] sm:$0xff]
      %s1713 = scalar_lea.vmem %s1, 20
      %v1714 = vld [vmem:[%s1713] sm:$0xf]
      %v1716 = vsel %vm273, %v1677, 0
      %v1719 = vsel %vm273, %v1678, 0
      %v1722 = vsel %vm273, %v1679, 0
      %v1725 = vsel %vm273, %v1680, 0
      %v1728 = vsel %vm273, %v1681, 0
      %v1731 = vsel %vm273, %v1682, 0
      %v1734 = vsel %vm273, %v1683, 0
      %v1737 = vsel %vm273, %v1684, 0
      %v1740 = vsel %vm273, %v1685, 0
      %v1743 = vsel %vm273, %v1686, 0
      %v1746 = vsel %vm273, %v1687, 0
      %v1749 = vsel %vm273, %v1688, 0
      %v1752 = vsel %vm273, %v1689, 0
      %v1755 = vsel %vm273, %v1690, 0
      %v1758 = vsel %vm273, %v1691, 0
      %v1761 = vsel %vm273, %v1692, 0
      %v1764 = vsel %vm273, %v1693, 0
      %v1767 = vsel %vm273, %v1694, 0
      %v1770 = vsel %vm273, %v1695, 0
      %v1773 = vsel %vm273, %v1696, 0
      %v1776 = vsel %vm273, %v1697, 0
      %v1779 = vsel %vm273, %v1698, 0
      %v1782 = vsel %vm273, %v1699, 0
      %v1785 = vsel %vm273, %v1700, 0
      %v1788 = vsel %vm273, %v1701, 0
      %v1791 = vsel %vm273, %v1702, 0
      %v1794 = vsel %vm273, %v1703, 0
      %v1797 = vsel %vm273, %v1704, 0
      %v1800 = vsel %vm273, %v1705, 0
      %v1803 = vsel %vm273, %v1706, 0
      %v1806 = vsel %vm273, %v1707, 0
      %v1809 = vsel %vm273, %v1708, 0
      %v1812 = vsel %vm273, %v1709, 0
      %v1815 = vsel %vm273, %v1710, 0
      %v1818 = vsel %vm273, %v1711, 0
      %v1821 = vsel %vm273, %v1712, 0
      %v1824 = vsel %vm382, %v1714, 0
      %1826 = vmatpush.msra.mxu0 0.0
      %1827 = vmatpush.msra.mxu0 0.0
      %1828 = vmatpush.msra.mxu0 0.0
      %1829 = vmatpush.msra.mxu0 0.0
      %1830 = vmatpush.msra.mxu0 0.0
      %1831 = vmatpush.msra.mxu0 0.0
      %1832 = vmatpush.msra.mxu0 0.0
      %1833 = vmatpush.msra.mxu0 0.0
      %1834 = vmatpush.msra.mxu0 0.0
      %1835 = vmatpush.msra.mxu0 0.0
      %1836 = vmatpush.msra.mxu0 0.0
      %1837 = vmatpush.msra.mxu0 0.0
      %1838 = vmatpush.msra.mxu0 0.0
      %1839 = vmatpush.msra.mxu0 0.0
      %1840 = vmatpush.msra.mxu0 0.0
      %1841 = vmatpush.msra.mxu0 %v1824
      %1842 = vmatmul.f32.gmra.mxu0 %v1716
      %v1843 = vpop.f32.mrf.mxu0
      %v1844 = vadd.f32 0.0, %v1843
      %1845 = vmatmul.f32.gmra.mxu0 %v1719
      %v1846 = vpop.f32.mrf.mxu0
      %v1847 = vadd.f32 0.0, %v1846
      %1848 = vmatmul.f32.gmra.mxu0 %v1722
      %v1849 = vpop.f32.mrf.mxu0
      %v1850 = vadd.f32 0.0, %v1849
      %1851 = vmatmul.f32.gmra.mxu0 %v1725
      %v1852 = vpop.f32.mrf.mxu0
      %v1853 = vadd.f32 0.0, %v1852
      %1854 = vmatmul.f32.gmra.mxu0 %v1728
      %v1855 = vpop.f32.mrf.mxu0
      %v1856 = vadd.f32 0.0, %v1855
      %1857 = vmatmul.f32.gmra.mxu0 %v1731
      %v1858 = vpop.f32.mrf.mxu0
      %v1859 = vadd.f32 0.0, %v1858
      %1860 = vmatmul.f32.gmra.mxu0 %v1734
      %v1861 = vpop.f32.mrf.mxu0
      %v1862 = vadd.f32 0.0, %v1861
      %1863 = vmatmul.f32.gmra.mxu0 %v1737
      %v1864 = vpop.f32.mrf.mxu0
      %v1865 = vadd.f32 0.0, %v1864
      %1866 = vmatmul.f32.gmra.mxu0 %v1740
      %v1867 = vpop.f32.mrf.mxu0
      %v1868 = vadd.f32 0.0, %v1867
      %1869 = vmatmul.f32.gmra.mxu0 %v1743
      %v1870 = vpop.f32.mrf.mxu0
      %v1871 = vadd.f32 0.0, %v1870
      %1872 = vmatmul.f32.gmra.mxu0 %v1746
      %v1873 = vpop.f32.mrf.mxu0
      %v1874 = vadd.f32 0.0, %v1873
      %1875 = vmatmul.f32.gmra.mxu0 %v1749
      %v1876 = vpop.f32.mrf.mxu0
      %v1877 = vadd.f32 0.0, %v1876
      %1878 = vmatmul.f32.gmra.mxu0 %v1752
      %v1879 = vpop.f32.mrf.mxu0
      %v1880 = vadd.f32 0.0, %v1879
      %1881 = vmatmul.f32.gmra.mxu0 %v1755
      %v1882 = vpop.f32.mrf.mxu0
      %v1883 = vadd.f32 0.0, %v1882
      %1884 = vmatmul.f32.gmra.mxu0 %v1758
      %v1885 = vpop.f32.mrf.mxu0
      %v1886 = vadd.f32 0.0, %v1885
      %1887 = vmatmul.f32.gmra.mxu0 %v1761
      %v1888 = vpop.f32.mrf.mxu0
      %v1889 = vadd.f32 0.0, %v1888
      %1890 = vmatmul.f32.gmra.mxu0 %v1764
      %v1891 = vpop.f32.mrf.mxu0
      %v1892 = vadd.f32 0.0, %v1891
      %1893 = vmatmul.f32.gmra.mxu0 %v1767
      %v1894 = vpop.f32.mrf.mxu0
      %v1895 = vadd.f32 0.0, %v1894
      %1896 = vmatmul.f32.gmra.mxu0 %v1770
      %v1897 = vpop.f32.mrf.mxu0
      %v1898 = vadd.f32 0.0, %v1897
      %1899 = vmatmul.f32.gmra.mxu0 %v1773
      %v1900 = vpop.f32.mrf.mxu0
      %v1901 = vadd.f32 0.0, %v1900
      %1902 = vmatmul.f32.gmra.mxu0 %v1776
      %v1903 = vpop.f32.mrf.mxu0
      %v1904 = vadd.f32 0.0, %v1903
      %1905 = vmatmul.f32.gmra.mxu0 %v1779
      %v1906 = vpop.f32.mrf.mxu0
      %v1907 = vadd.f32 0.0, %v1906
      %1908 = vmatmul.f32.gmra.mxu0 %v1782
      %v1909 = vpop.f32.mrf.mxu0
      %v1910 = vadd.f32 0.0, %v1909
      %1911 = vmatmul.f32.gmra.mxu0 %v1785
      %v1912 = vpop.f32.mrf.mxu0
      %v1913 = vadd.f32 0.0, %v1912
      %1914 = vmatmul.f32.gmra.mxu0 %v1788
      %v1915 = vpop.f32.mrf.mxu0
      %v1916 = vadd.f32 0.0, %v1915
      %1917 = vmatmul.f32.gmra.mxu0 %v1791
      %v1918 = vpop.f32.mrf.mxu0
      %v1919 = vadd.f32 0.0, %v1918
      %1920 = vmatmul.f32.gmra.mxu0 %v1794
      %v1921 = vpop.f32.mrf.mxu0
      %v1922 = vadd.f32 0.0, %v1921
      %1923 = vmatmul.f32.gmra.mxu0 %v1797
      %v1924 = vpop.f32.mrf.mxu0
      %v1925 = vadd.f32 0.0, %v1924
      %1926 = vmatmul.f32.gmra.mxu0 %v1800
      %v1927 = vpop.f32.mrf.mxu0
      %v1928 = vadd.f32 0.0, %v1927
      %1929 = vmatmul.f32.gmra.mxu0 %v1803
      %v1930 = vpop.f32.mrf.mxu0
      %v1931 = vadd.f32 0.0, %v1930
      %1932 = vmatmul.f32.gmra.mxu0 %v1806
      %v1933 = vpop.f32.mrf.mxu0
      %v1934 = vadd.f32 0.0, %v1933
      %1935 = vmatmul.f32.gmra.mxu0 %v1809
      %v1936 = vpop.f32.mrf.mxu0
      %v1937 = vadd.f32 0.0, %v1936
      %1938 = vmatmul.f32.gmra.mxu0 %v1812
      %v1939 = vpop.f32.mrf.mxu0
      %v1940 = vadd.f32 0.0, %v1939
      %1941 = vmatmul.f32.gmra.mxu0 %v1815
      %v1942 = vpop.f32.mrf.mxu0
      %v1943 = vadd.f32 0.0, %v1942
      %1944 = vmatmul.f32.gmra.mxu0 %v1818
      %v1945 = vpop.f32.mrf.mxu0
      %v1946 = vadd.f32 0.0, %v1945
      %1947 = vmatmul.f32.gmra.mxu0 %v1821
      %v1948 = vpop.f32.mrf.mxu0
      %v1949 = vadd.f32 0.0, %v1948
      %1950 = vdwg.mxu0
      %v1951 = vadd.f32 %v1641, %v1844
      %v1952 = vadd.f32 %v1642, %v1847
      %v1953 = vadd.f32 %v1643, %v1850
      %v1954 = vadd.f32 %v1644, %v1853
      %v1955 = vadd.f32 %v1645, %v1856
      %v1956 = vadd.f32 %v1646, %v1859
      %v1957 = vadd.f32 %v1647, %v1862
      %v1958 = vadd.f32 %v1648, %v1865
      %v1959 = vadd.f32 %v1649, %v1868
      %v1960 = vadd.f32 %v1650, %v1871
      %v1961 = vadd.f32 %v1651, %v1874
      %v1962 = vadd.f32 %v1652, %v1877
      %v1963 = vadd.f32 %v1653, %v1880
      %v1964 = vadd.f32 %v1654, %v1883
      %v1965 = vadd.f32 %v1655, %v1886
      %v1966 = vadd.f32 %v1656, %v1889
      %v1967 = vadd.f32 %v1657, %v1892
      %v1968 = vadd.f32 %v1658, %v1895
      %v1969 = vadd.f32 %v1659, %v1898
      %v1970 = vadd.f32 %v1660, %v1901
      %v1971 = vadd.f32 %v1661, %v1904
      %v1972 = vadd.f32 %v1662, %v1907
      %v1973 = vadd.f32 %v1663, %v1910
      %v1974 = vadd.f32 %v1664, %v1913
      %v1975 = vadd.f32 %v1665, %v1916
      %v1976 = vadd.f32 %v1666, %v1919
      %v1977 = vadd.f32 %v1667, %v1922
      %v1978 = vadd.f32 %v1668, %v1925
      %v1979 = vadd.f32 %v1669, %v1928
      %v1980 = vadd.f32 %v1670, %v1931
      %v1981 = vadd.f32 %v1671, %v1934
      %v1982 = vadd.f32 %v1672, %v1937
      %v1983 = vadd.f32 %v1673, %v1940
      %v1984 = vadd.f32 %v1674, %v1943
      %v1985 = vadd.f32 %v1675, %v1946
      %v1986 = vadd.f32 %v1676, %v1949
      %v1987 = vld [vmem:[%s192 + $0x24] sm:$0xff]
      %v1988 = vld [vmem:[%s192 + $0x2c] sm:$0xff]
      %v1989 = vld [vmem:[%s192 + $0x34] sm:$0xff]
      %v1990 = vld [vmem:[%s192 + $0x3c] sm:$0xff]
      %v1991 = vld [vmem:[%s192 + $0x44] sm:$0xff]
      %v1992 = vld [vmem:[%s192 + $0x4c] sm:$0xff]
      %v1993 = vld [vmem:[%s192 + $0x54] sm:$0xff]
      %v1994 = vld [vmem:[%s192 + $0x5c] sm:$0xff]
      %v1995 = vld [vmem:[%s192 + $0x64] sm:$0xff]
      %v1996 = vld [vmem:[%s192 + $0x6c] sm:$0xff]
      %v1997 = vld [vmem:[%s192 + $0x74] sm:$0xff]
      %v1998 = vld [vmem:[%s192 + $0x7c] sm:$0xff]
      %v1999 = vld [vmem:[%s192 + $0x84] sm:$0xff]
      %v2000 = vld [vmem:[%s192 + $0x8c] sm:$0xff]
      %v2001 = vld [vmem:[%s192 + $0x94] sm:$0xff]
      %v2002 = vld [vmem:[%s192 + $0x9c] sm:$0xff]
      %v2003 = vld [vmem:[%s192 + $0xa4] sm:$0xff]
      %v2004 = vld [vmem:[%s192 + $0xac] sm:$0xff]
      %v2005 = vld [vmem:[%s192 + $0xb4] sm:$0xff]
      %v2006 = vld [vmem:[%s192 + $0xbc] sm:$0xff]
      %v2007 = vld [vmem:[%s192 + $0xc4] sm:$0xff]
      %v2008 = vld [vmem:[%s192 + $0xcc] sm:$0xff]
      %v2009 = vld [vmem:[%s192 + $0xd4] sm:$0xff]
      %v2010 = vld [vmem:[%s192 + $0xdc] sm:$0xff]
      %v2011 = vld [vmem:[%s192 + $0xe4] sm:$0xff]
      %v2012 = vld [vmem:[%s192 + $0xec] sm:$0xff]
      %v2013 = vld [vmem:[%s192 + $0xf4] sm:$0xff]
      %v2014 = vld [vmem:[%s192 + $0xfc] sm:$0xff]
      %v2015 = vld [vmem:[%s192 + $0x104] sm:$0xff]
      %v2016 = vld [vmem:[%s192 + $0x10c] sm:$0xff]
      %v2017 = vld [vmem:[%s192 + $0x114] sm:$0xff]
      %v2018 = vld [vmem:[%s192 + $0x11c] sm:$0xff]
      %v2019 = vld [vmem:[%s192 + $0x124] sm:$0xff]
      %v2020 = vld [vmem:[%s192 + $0x12c] sm:$0xff]
      %v2021 = vld [vmem:[%s192 + $0x134] sm:$0xff]
      %v2022 = vld [vmem:[%s192 + $0x13c] sm:$0xff]
      %s2023 = scalar_lea.vmem %s1, 24
      %v2024 = vld [vmem:[%s2023] sm:$0xf]
      %v2026 = vsel %vm273, %v1987, 0
      %v2029 = vsel %vm273, %v1988, 0
      %v2032 = vsel %vm273, %v1989, 0
      %v2035 = vsel %vm273, %v1990, 0
      %v2038 = vsel %vm273, %v1991, 0
      %v2041 = vsel %vm273, %v1992, 0
      %v2044 = vsel %vm273, %v1993, 0
      %v2047 = vsel %vm273, %v1994, 0
      %v2050 = vsel %vm273, %v1995, 0
      %v2053 = vsel %vm273, %v1996, 0
      %v2056 = vsel %vm273, %v1997, 0
      %v2059 = vsel %vm273, %v1998, 0
      %v2062 = vsel %vm273, %v1999, 0
      %v2065 = vsel %vm273, %v2000, 0
      %v2068 = vsel %vm273, %v2001, 0
      %v2071 = vsel %vm273, %v2002, 0
      %v2074 = vsel %vm273, %v2003, 0
      %v2077 = vsel %vm273, %v2004, 0
      %v2080 = vsel %vm273, %v2005, 0
      %v2083 = vsel %vm273, %v2006, 0
      %v2086 = vsel %vm273, %v2007, 0
      %v2089 = vsel %vm273, %v2008, 0
      %v2092 = vsel %vm273, %v2009, 0
      %v2095 = vsel %vm273, %v2010, 0
      %v2098 = vsel %vm273, %v2011, 0
      %v2101 = vsel %vm273, %v2012, 0
      %v2104 = vsel %vm273, %v2013, 0
      %v2107 = vsel %vm273, %v2014, 0
      %v2110 = vsel %vm273, %v2015, 0
      %v2113 = vsel %vm273, %v2016, 0
      %v2116 = vsel %vm273, %v2017, 0
      %v2119 = vsel %vm273, %v2018, 0
      %v2122 = vsel %vm273, %v2019, 0
      %v2125 = vsel %vm273, %v2020, 0
      %v2128 = vsel %vm273, %v2021, 0
      %v2131 = vsel %vm273, %v2022, 0
      %v2134 = vsel %vm382, %v2024, 0
      %2136 = vmatpush.msra.mxu0 0.0
      %2137 = vmatpush.msra.mxu0 0.0
      %2138 = vmatpush.msra.mxu0 0.0
      %2139 = vmatpush.msra.mxu0 0.0
      %2140 = vmatpush.msra.mxu0 0.0
      %2141 = vmatpush.msra.mxu0 0.0
      %2142 = vmatpush.msra.mxu0 0.0
      %2143 = vmatpush.msra.mxu0 0.0
      %2144 = vmatpush.msra.mxu0 0.0
      %2145 = vmatpush.msra.mxu0 0.0
      %2146 = vmatpush.msra.mxu0 0.0
      %2147 = vmatpush.msra.mxu0 0.0
      %2148 = vmatpush.msra.mxu0 0.0
      %2149 = vmatpush.msra.mxu0 0.0
      %2150 = vmatpush.msra.mxu0 0.0
      %2151 = vmatpush.msra.mxu0 %v2134
      %2152 = vmatmul.f32.gmra.mxu0 %v2026
      %v2153 = vpop.f32.mrf.mxu0
      %v2154 = vadd.f32 0.0, %v2153
      %2155 = vmatmul.f32.gmra.mxu0 %v2029
      %v2156 = vpop.f32.mrf.mxu0
      %v2157 = vadd.f32 0.0, %v2156
      %2158 = vmatmul.f32.gmra.mxu0 %v2032
      %v2159 = vpop.f32.mrf.mxu0
      %v2160 = vadd.f32 0.0, %v2159
      %2161 = vmatmul.f32.gmra.mxu0 %v2035
      %v2162 = vpop.f32.mrf.mxu0
      %v2163 = vadd.f32 0.0, %v2162
      %2164 = vmatmul.f32.gmra.mxu0 %v2038
      %v2165 = vpop.f32.mrf.mxu0
      %v2166 = vadd.f32 0.0, %v2165
      %2167 = vmatmul.f32.gmra.mxu0 %v2041
      %v2168 = vpop.f32.mrf.mxu0
      %v2169 = vadd.f32 0.0, %v2168
      %2170 = vmatmul.f32.gmra.mxu0 %v2044
      %v2171 = vpop.f32.mrf.mxu0
      %v2172 = vadd.f32 0.0, %v2171
      %2173 = vmatmul.f32.gmra.mxu0 %v2047
      %v2174 = vpop.f32.mrf.mxu0
      %v2175 = vadd.f32 0.0, %v2174
      %2176 = vmatmul.f32.gmra.mxu0 %v2050
      %v2177 = vpop.f32.mrf.mxu0
      %v2178 = vadd.f32 0.0, %v2177
      %2179 = vmatmul.f32.gmra.mxu0 %v2053
      %v2180 = vpop.f32.mrf.mxu0
      %v2181 = vadd.f32 0.0, %v2180
      %2182 = vmatmul.f32.gmra.mxu0 %v2056
      %v2183 = vpop.f32.mrf.mxu0
      %v2184 = vadd.f32 0.0, %v2183
      %2185 = vmatmul.f32.gmra.mxu0 %v2059
      %v2186 = vpop.f32.mrf.mxu0
      %v2187 = vadd.f32 0.0, %v2186
      %2188 = vmatmul.f32.gmra.mxu0 %v2062
      %v2189 = vpop.f32.mrf.mxu0
      %v2190 = vadd.f32 0.0, %v2189
      %2191 = vmatmul.f32.gmra.mxu0 %v2065
      %v2192 = vpop.f32.mrf.mxu0
      %v2193 = vadd.f32 0.0, %v2192
      %2194 = vmatmul.f32.gmra.mxu0 %v2068
      %v2195 = vpop.f32.mrf.mxu0
      %v2196 = vadd.f32 0.0, %v2195
      %2197 = vmatmul.f32.gmra.mxu0 %v2071
      %v2198 = vpop.f32.mrf.mxu0
      %v2199 = vadd.f32 0.0, %v2198
      %2200 = vmatmul.f32.gmra.mxu0 %v2074
      %v2201 = vpop.f32.mrf.mxu0
      %v2202 = vadd.f32 0.0, %v2201
      %2203 = vmatmul.f32.gmra.mxu0 %v2077
      %v2204 = vpop.f32.mrf.mxu0
      %v2205 = vadd.f32 0.0, %v2204
      %2206 = vmatmul.f32.gmra.mxu0 %v2080
      %v2207 = vpop.f32.mrf.mxu0
      %v2208 = vadd.f32 0.0, %v2207
      %2209 = vmatmul.f32.gmra.mxu0 %v2083
      %v2210 = vpop.f32.mrf.mxu0
      %v2211 = vadd.f32 0.0, %v2210
      %2212 = vmatmul.f32.gmra.mxu0 %v2086
      %v2213 = vpop.f32.mrf.mxu0
      %v2214 = vadd.f32 0.0, %v2213
      %2215 = vmatmul.f32.gmra.mxu0 %v2089
      %v2216 = vpop.f32.mrf.mxu0
      %v2217 = vadd.f32 0.0, %v2216
      %2218 = vmatmul.f32.gmra.mxu0 %v2092
      %v2219 = vpop.f32.mrf.mxu0
      %v2220 = vadd.f32 0.0, %v2219
      %2221 = vmatmul.f32.gmra.mxu0 %v2095
      %v2222 = vpop.f32.mrf.mxu0
      %v2223 = vadd.f32 0.0, %v2222
      %2224 = vmatmul.f32.gmra.mxu0 %v2098
      %v2225 = vpop.f32.mrf.mxu0
      %v2226 = vadd.f32 0.0, %v2225
      %2227 = vmatmul.f32.gmra.mxu0 %v2101
      %v2228 = vpop.f32.mrf.mxu0
      %v2229 = vadd.f32 0.0, %v2228
      %2230 = vmatmul.f32.gmra.mxu0 %v2104
      %v2231 = vpop.f32.mrf.mxu0
      %v2232 = vadd.f32 0.0, %v2231
      %2233 = vmatmul.f32.gmra.mxu0 %v2107
      %v2234 = vpop.f32.mrf.mxu0
      %v2235 = vadd.f32 0.0, %v2234
      %2236 = vmatmul.f32.gmra.mxu0 %v2110
      %v2237 = vpop.f32.mrf.mxu0
      %v2238 = vadd.f32 0.0, %v2237
      %2239 = vmatmul.f32.gmra.mxu0 %v2113
      %v2240 = vpop.f32.mrf.mxu0
      %v2241 = vadd.f32 0.0, %v2240
      %2242 = vmatmul.f32.gmra.mxu0 %v2116
      %v2243 = vpop.f32.mrf.mxu0
      %v2244 = vadd.f32 0.0, %v2243
      %2245 = vmatmul.f32.gmra.mxu0 %v2119
      %v2246 = vpop.f32.mrf.mxu0
      %v2247 = vadd.f32 0.0, %v2246
      %2248 = vmatmul.f32.gmra.mxu0 %v2122
      %v2249 = vpop.f32.mrf.mxu0
      %v2250 = vadd.f32 0.0, %v2249
      %2251 = vmatmul.f32.gmra.mxu0 %v2125
      %v2252 = vpop.f32.mrf.mxu0
      %v2253 = vadd.f32 0.0, %v2252
      %2254 = vmatmul.f32.gmra.mxu0 %v2128
      %v2255 = vpop.f32.mrf.mxu0
      %v2256 = vadd.f32 0.0, %v2255
      %2257 = vmatmul.f32.gmra.mxu0 %v2131
      %v2258 = vpop.f32.mrf.mxu0
      %v2259 = vadd.f32 0.0, %v2258
      %2260 = vdwg.mxu0
      %v2261 = vadd.f32 %v1951, %v2154
      %v2262 = vadd.f32 %v1952, %v2157
      %v2263 = vadd.f32 %v1953, %v2160
      %v2264 = vadd.f32 %v1954, %v2163
      %v2265 = vadd.f32 %v1955, %v2166
      %v2266 = vadd.f32 %v1956, %v2169
      %v2267 = vadd.f32 %v1957, %v2172
      %v2268 = vadd.f32 %v1958, %v2175
      %v2269 = vadd.f32 %v1959, %v2178
      %v2270 = vadd.f32 %v1960, %v2181
      %v2271 = vadd.f32 %v1961, %v2184
      %v2272 = vadd.f32 %v1962, %v2187
      %v2273 = vadd.f32 %v1963, %v2190
      %v2274 = vadd.f32 %v1964, %v2193
      %v2275 = vadd.f32 %v1965, %v2196
      %v2276 = vadd.f32 %v1966, %v2199
      %v2277 = vadd.f32 %v1967, %v2202
      %v2278 = vadd.f32 %v1968, %v2205
      %v2279 = vadd.f32 %v1969, %v2208
      %v2280 = vadd.f32 %v1970, %v2211
      %v2281 = vadd.f32 %v1971, %v2214
      %v2282 = vadd.f32 %v1972, %v2217
      %v2283 = vadd.f32 %v1973, %v2220
      %v2284 = vadd.f32 %v1974, %v2223
      %v2285 = vadd.f32 %v1975, %v2226
      %v2286 = vadd.f32 %v1976, %v2229
      %v2287 = vadd.f32 %v1977, %v2232
      %v2288 = vadd.f32 %v1978, %v2235
      %v2289 = vadd.f32 %v1979, %v2238
      %v2290 = vadd.f32 %v1980, %v2241
      %v2291 = vadd.f32 %v1981, %v2244
      %v2292 = vadd.f32 %v1982, %v2247
      %v2293 = vadd.f32 %v1983, %v2250
      %v2294 = vadd.f32 %v1984, %v2253
      %v2295 = vadd.f32 %v1985, %v2256
      %v2296 = vadd.f32 %v1986, %v2259
      %v2297 = vld [vmem:[%s192 + $0x25] sm:$0xff]
      %v2298 = vld [vmem:[%s192 + $0x2d] sm:$0xff]
      %v2299 = vld [vmem:[%s192 + $0x35] sm:$0xff]
      %v2300 = vld [vmem:[%s192 + $0x3d] sm:$0xff]
      %v2301 = vld [vmem:[%s192 + $0x45] sm:$0xff]
      %v2302 = vld [vmem:[%s192 + $0x4d] sm:$0xff]
      %v2303 = vld [vmem:[%s192 + $0x55] sm:$0xff]
      %v2304 = vld [vmem:[%s192 + $0x5d] sm:$0xff]
      %v2305 = vld [vmem:[%s192 + $0x65] sm:$0xff]
      %v2306 = vld [vmem:[%s192 + $0x6d] sm:$0xff]
      %v2307 = vld [vmem:[%s192 + $0x75] sm:$0xff]
      %v2308 = vld [vmem:[%s192 + $0x7d] sm:$0xff]
      %v2309 = vld [vmem:[%s192 + $0x85] sm:$0xff]
      %v2310 = vld [vmem:[%s192 + $0x8d] sm:$0xff]
      %v2311 = vld [vmem:[%s192 + $0x95] sm:$0xff]
      %v2312 = vld [vmem:[%s192 + $0x9d] sm:$0xff]
      %v2313 = vld [vmem:[%s192 + $0xa5] sm:$0xff]
      %v2314 = vld [vmem:[%s192 + $0xad] sm:$0xff]
      %v2315 = vld [vmem:[%s192 + $0xb5] sm:$0xff]
      %v2316 = vld [vmem:[%s192 + $0xbd] sm:$0xff]
      %v2317 = vld [vmem:[%s192 + $0xc5] sm:$0xff]
      %v2318 = vld [vmem:[%s192 + $0xcd] sm:$0xff]
      %v2319 = vld [vmem:[%s192 + $0xd5] sm:$0xff]
      %v2320 = vld [vmem:[%s192 + $0xdd] sm:$0xff]
      %v2321 = vld [vmem:[%s192 + $0xe5] sm:$0xff]
      %v2322 = vld [vmem:[%s192 + $0xed] sm:$0xff]
      %v2323 = vld [vmem:[%s192 + $0xf5] sm:$0xff]
      %v2324 = vld [vmem:[%s192 + $0xfd] sm:$0xff]
      %v2325 = vld [vmem:[%s192 + $0x105] sm:$0xff]
      %v2326 = vld [vmem:[%s192 + $0x10d] sm:$0xff]
      %v2327 = vld [vmem:[%s192 + $0x115] sm:$0xff]
      %v2328 = vld [vmem:[%s192 + $0x11d] sm:$0xff]
      %v2329 = vld [vmem:[%s192 + $0x125] sm:$0xff]
      %v2330 = vld [vmem:[%s192 + $0x12d] sm:$0xff]
      %v2331 = vld [vmem:[%s192 + $0x135] sm:$0xff]
      %v2332 = vld [vmem:[%s192 + $0x13d] sm:$0xff]
      %s2333 = scalar_lea.vmem %s1, 28
      %v2334 = vld [vmem:[%s2333] sm:$0xf]
      %v2336 = vsel %vm273, %v2297, 0
      %v2339 = vsel %vm273, %v2298, 0
      %v2342 = vsel %vm273, %v2299, 0
      %v2345 = vsel %vm273, %v2300, 0
      %v2348 = vsel %vm273, %v2301, 0
      %v2351 = vsel %vm273, %v2302, 0
      %v2354 = vsel %vm273, %v2303, 0
      %v2357 = vsel %vm273, %v2304, 0
      %v2360 = vsel %vm273, %v2305, 0
      %v2363 = vsel %vm273, %v2306, 0
      %v2366 = vsel %vm273, %v2307, 0
      %v2369 = vsel %vm273, %v2308, 0
      %v2372 = vsel %vm273, %v2309, 0
      %v2375 = vsel %vm273, %v2310, 0
      %v2378 = vsel %vm273, %v2311, 0
      %v2381 = vsel %vm273, %v2312, 0
      %v2384 = vsel %vm273, %v2313, 0
      %v2387 = vsel %vm273, %v2314, 0
      %v2390 = vsel %vm273, %v2315, 0
      %v2393 = vsel %vm273, %v2316, 0
      %v2396 = vsel %vm273, %v2317, 0
      %v2399 = vsel %vm273, %v2318, 0
      %v2402 = vsel %vm273, %v2319, 0
      %v2405 = vsel %vm273, %v2320, 0
      %v2408 = vsel %vm273, %v2321, 0
      %v2411 = vsel %vm273, %v2322, 0
      %v2414 = vsel %vm273, %v2323, 0
      %v2417 = vsel %vm273, %v2324, 0
      %v2420 = vsel %vm273, %v2325, 0
      %v2423 = vsel %vm273, %v2326, 0
      %v2426 = vsel %vm273, %v2327, 0
      %v2429 = vsel %vm273, %v2328, 0
      %v2432 = vsel %vm273, %v2329, 0
      %v2435 = vsel %vm273, %v2330, 0
      %v2438 = vsel %vm273, %v2331, 0
      %v2441 = vsel %vm273, %v2332, 0
      %v2444 = vsel %vm382, %v2334, 0
      %2446 = vmatpush.msra.mxu0 0.0
      %2447 = vmatpush.msra.mxu0 0.0
      %2448 = vmatpush.msra.mxu0 0.0
      %2449 = vmatpush.msra.mxu0 0.0
      %2450 = vmatpush.msra.mxu0 0.0
      %2451 = vmatpush.msra.mxu0 0.0
      %2452 = vmatpush.msra.mxu0 0.0
      %2453 = vmatpush.msra.mxu0 0.0
      %2454 = vmatpush.msra.mxu0 0.0
      %2455 = vmatpush.msra.mxu0 0.0
      %2456 = vmatpush.msra.mxu0 0.0
      %2457 = vmatpush.msra.mxu0 0.0
      %2458 = vmatpush.msra.mxu0 0.0
      %2459 = vmatpush.msra.mxu0 0.0
      %2460 = vmatpush.msra.mxu0 0.0
      %2461 = vmatpush.msra.mxu0 %v2444
      %2462 = vmatmul.f32.gmra.mxu0 %v2336
      %v2463 = vpop.f32.mrf.mxu0
      %v2464 = vadd.f32 0.0, %v2463
      %2465 = vmatmul.f32.gmra.mxu0 %v2339
      %v2466 = vpop.f32.mrf.mxu0
      %v2467 = vadd.f32 0.0, %v2466
      %2468 = vmatmul.f32.gmra.mxu0 %v2342
      %v2469 = vpop.f32.mrf.mxu0
      %v2470 = vadd.f32 0.0, %v2469
      %2471 = vmatmul.f32.gmra.mxu0 %v2345
      %v2472 = vpop.f32.mrf.mxu0
      %v2473 = vadd.f32 0.0, %v2472
      %2474 = vmatmul.f32.gmra.mxu0 %v2348
      %v2475 = vpop.f32.mrf.mxu0
      %v2476 = vadd.f32 0.0, %v2475
      %2477 = vmatmul.f32.gmra.mxu0 %v2351
      %v2478 = vpop.f32.mrf.mxu0
      %v2479 = vadd.f32 0.0, %v2478
      %2480 = vmatmul.f32.gmra.mxu0 %v2354
      %v2481 = vpop.f32.mrf.mxu0
      %v2482 = vadd.f32 0.0, %v2481
      %2483 = vmatmul.f32.gmra.mxu0 %v2357
      %v2484 = vpop.f32.mrf.mxu0
      %v2485 = vadd.f32 0.0, %v2484
      %2486 = vmatmul.f32.gmra.mxu0 %v2360
      %v2487 = vpop.f32.mrf.mxu0
      %v2488 = vadd.f32 0.0, %v2487
      %2489 = vmatmul.f32.gmra.mxu0 %v2363
      %v2490 = vpop.f32.mrf.mxu0
      %v2491 = vadd.f32 0.0, %v2490
      %2492 = vmatmul.f32.gmra.mxu0 %v2366
      %v2493 = vpop.f32.mrf.mxu0
      %v2494 = vadd.f32 0.0, %v2493
      %2495 = vmatmul.f32.gmra.mxu0 %v2369
      %v2496 = vpop.f32.mrf.mxu0
      %v2497 = vadd.f32 0.0, %v2496
      %2498 = vmatmul.f32.gmra.mxu0 %v2372
      %v2499 = vpop.f32.mrf.mxu0
      %v2500 = vadd.f32 0.0, %v2499
      %2501 = vmatmul.f32.gmra.mxu0 %v2375
      %v2502 = vpop.f32.mrf.mxu0
      %v2503 = vadd.f32 0.0, %v2502
      %2504 = vmatmul.f32.gmra.mxu0 %v2378
      %v2505 = vpop.f32.mrf.mxu0
      %v2506 = vadd.f32 0.0, %v2505
      %2507 = vmatmul.f32.gmra.mxu0 %v2381
      %v2508 = vpop.f32.mrf.mxu0
      %v2509 = vadd.f32 0.0, %v2508
      %2510 = vmatmul.f32.gmra.mxu0 %v2384
      %v2511 = vpop.f32.mrf.mxu0
      %v2512 = vadd.f32 0.0, %v2511
      %2513 = vmatmul.f32.gmra.mxu0 %v2387
      %v2514 = vpop.f32.mrf.mxu0
      %v2515 = vadd.f32 0.0, %v2514
      %2516 = vmatmul.f32.gmra.mxu0 %v2390
      %v2517 = vpop.f32.mrf.mxu0
      %v2518 = vadd.f32 0.0, %v2517
      %2519 = vmatmul.f32.gmra.mxu0 %v2393
      %v2520 = vpop.f32.mrf.mxu0
      %v2521 = vadd.f32 0.0, %v2520
      %2522 = vmatmul.f32.gmra.mxu0 %v2396
      %v2523 = vpop.f32.mrf.mxu0
      %v2524 = vadd.f32 0.0, %v2523
      %2525 = vmatmul.f32.gmra.mxu0 %v2399
      %v2526 = vpop.f32.mrf.mxu0
      %v2527 = vadd.f32 0.0, %v2526
      %2528 = vmatmul.f32.gmra.mxu0 %v2402
      %v2529 = vpop.f32.mrf.mxu0
      %v2530 = vadd.f32 0.0, %v2529
      %2531 = vmatmul.f32.gmra.mxu0 %v2405
      %v2532 = vpop.f32.mrf.mxu0
      %v2533 = vadd.f32 0.0, %v2532
      %2534 = vmatmul.f32.gmra.mxu0 %v2408
      %v2535 = vpop.f32.mrf.mxu0
      %v2536 = vadd.f32 0.0, %v2535
      %2537 = vmatmul.f32.gmra.mxu0 %v2411
      %v2538 = vpop.f32.mrf.mxu0
      %v2539 = vadd.f32 0.0, %v2538
      %2540 = vmatmul.f32.gmra.mxu0 %v2414
      %v2541 = vpop.f32.mrf.mxu0
      %v2542 = vadd.f32 0.0, %v2541
      %2543 = vmatmul.f32.gmra.mxu0 %v2417
      %v2544 = vpop.f32.mrf.mxu0
      %v2545 = vadd.f32 0.0, %v2544
      %2546 = vmatmul.f32.gmra.mxu0 %v2420
      %v2547 = vpop.f32.mrf.mxu0
      %v2548 = vadd.f32 0.0, %v2547
      %2549 = vmatmul.f32.gmra.mxu0 %v2423
      %v2550 = vpop.f32.mrf.mxu0
      %v2551 = vadd.f32 0.0, %v2550
      %2552 = vmatmul.f32.gmra.mxu0 %v2426
      %v2553 = vpop.f32.mrf.mxu0
      %v2554 = vadd.f32 0.0, %v2553
      %2555 = vmatmul.f32.gmra.mxu0 %v2429
      %v2556 = vpop.f32.mrf.mxu0
      %v2557 = vadd.f32 0.0, %v2556
      %2558 = vmatmul.f32.gmra.mxu0 %v2432
      %v2559 = vpop.f32.mrf.mxu0
      %v2560 = vadd.f32 0.0, %v2559
      %2561 = vmatmul.f32.gmra.mxu0 %v2435
      %v2562 = vpop.f32.mrf.mxu0
      %v2563 = vadd.f32 0.0, %v2562
      %2564 = vmatmul.f32.gmra.mxu0 %v2438
      %v2565 = vpop.f32.mrf.mxu0
      %v2566 = vadd.f32 0.0, %v2565
      %2567 = vmatmul.f32.gmra.mxu0 %v2441
      %v2568 = vpop.f32.mrf.mxu0
      %v2569 = vadd.f32 0.0, %v2568
      %2570 = vdwg.mxu0
      %v2571 = vadd.f32 %v2261, %v2464
      %v2572 = vadd.f32 %v2262, %v2467
      %v2573 = vadd.f32 %v2263, %v2470
      %v2574 = vadd.f32 %v2264, %v2473
      %v2575 = vadd.f32 %v2265, %v2476
      %v2576 = vadd.f32 %v2266, %v2479
      %v2577 = vadd.f32 %v2267, %v2482
      %v2578 = vadd.f32 %v2268, %v2485
      %v2579 = vadd.f32 %v2269, %v2488
      %v2580 = vadd.f32 %v2270, %v2491
      %v2581 = vadd.f32 %v2271, %v2494
      %v2582 = vadd.f32 %v2272, %v2497
      %v2583 = vadd.f32 %v2273, %v2500
      %v2584 = vadd.f32 %v2274, %v2503
      %v2585 = vadd.f32 %v2275, %v2506
      %v2586 = vadd.f32 %v2276, %v2509
      %v2587 = vadd.f32 %v2277, %v2512
      %v2588 = vadd.f32 %v2278, %v2515
      %v2589 = vadd.f32 %v2279, %v2518
      %v2590 = vadd.f32 %v2280, %v2521
      %v2591 = vadd.f32 %v2281, %v2524
      %v2592 = vadd.f32 %v2282, %v2527
      %v2593 = vadd.f32 %v2283, %v2530
      %v2594 = vadd.f32 %v2284, %v2533
      %v2595 = vadd.f32 %v2285, %v2536
      %v2596 = vadd.f32 %v2286, %v2539
      %v2597 = vadd.f32 %v2287, %v2542
      %v2598 = vadd.f32 %v2288, %v2545
      %v2599 = vadd.f32 %v2289, %v2548
      %v2600 = vadd.f32 %v2290, %v2551
      %v2601 = vadd.f32 %v2291, %v2554
      %v2602 = vadd.f32 %v2292, %v2557
      %v2603 = vadd.f32 %v2293, %v2560
      %v2604 = vadd.f32 %v2294, %v2563
      %v2605 = vadd.f32 %v2295, %v2566
      %v2606 = vadd.f32 %v2296, %v2569
      %v2607 = vld [vmem:[%s192 + $0x26] sm:$0xff]
      %v2608 = vld [vmem:[%s192 + $0x2e] sm:$0xff]
      %v2609 = vld [vmem:[%s192 + $0x36] sm:$0xff]
      %v2610 = vld [vmem:[%s192 + $0x3e] sm:$0xff]
      %v2611 = vld [vmem:[%s192 + $0x46] sm:$0xff]
      %v2612 = vld [vmem:[%s192 + $0x4e] sm:$0xff]
      %v2613 = vld [vmem:[%s192 + $0x56] sm:$0xff]
      %v2614 = vld [vmem:[%s192 + $0x5e] sm:$0xff]
      %v2615 = vld [vmem:[%s192 + $0x66] sm:$0xff]
      %v2616 = vld [vmem:[%s192 + $0x6e] sm:$0xff]
      %v2617 = vld [vmem:[%s192 + $0x76] sm:$0xff]
      %v2618 = vld [vmem:[%s192 + $0x7e] sm:$0xff]
      %v2619 = vld [vmem:[%s192 + $0x86] sm:$0xff]
      %v2620 = vld [vmem:[%s192 + $0x8e] sm:$0xff]
      %v2621 = vld [vmem:[%s192 + $0x96] sm:$0xff]
      %v2622 = vld [vmem:[%s192 + $0x9e] sm:$0xff]
      %v2623 = vld [vmem:[%s192 + $0xa6] sm:$0xff]
      %v2624 = vld [vmem:[%s192 + $0xae] sm:$0xff]
      %v2625 = vld [vmem:[%s192 + $0xb6] sm:$0xff]
      %v2626 = vld [vmem:[%s192 + $0xbe] sm:$0xff]
      %v2627 = vld [vmem:[%s192 + $0xc6] sm:$0xff]
      %v2628 = vld [vmem:[%s192 + $0xce] sm:$0xff]
      %v2629 = vld [vmem:[%s192 + $0xd6] sm:$0xff]
      %v2630 = vld [vmem:[%s192 + $0xde] sm:$0xff]
      %v2631 = vld [vmem:[%s192 + $0xe6] sm:$0xff]
      %v2632 = vld [vmem:[%s192 + $0xee] sm:$0xff]
      %v2633 = vld [vmem:[%s192 + $0xf6] sm:$0xff]
      %v2634 = vld [vmem:[%s192 + $0xfe] sm:$0xff]
      %v2635 = vld [vmem:[%s192 + $0x106] sm:$0xff]
      %v2636 = vld [vmem:[%s192 + $0x10e] sm:$0xff]
      %v2637 = vld [vmem:[%s192 + $0x116] sm:$0xff]
      %v2638 = vld [vmem:[%s192 + $0x11e] sm:$0xff]
      %v2639 = vld [vmem:[%s192 + $0x126] sm:$0xff]
      %v2640 = vld [vmem:[%s192 + $0x12e] sm:$0xff]
      %v2641 = vld [vmem:[%s192 + $0x136] sm:$0xff]
      %v2642 = vld [vmem:[%s192 + $0x13e] sm:$0xff]
      %s2643 = scalar_lea.vmem %s1, 32
      %v2644 = vld [vmem:[%s2643] sm:$0xf]
      %v2646 = vsel %vm273, %v2607, 0
      %v2649 = vsel %vm273, %v2608, 0
      %v2652 = vsel %vm273, %v2609, 0
      %v2655 = vsel %vm273, %v2610, 0
      %v2658 = vsel %vm273, %v2611, 0
      %v2661 = vsel %vm273, %v2612, 0
      %v2664 = vsel %vm273, %v2613, 0
      %v2667 = vsel %vm273, %v2614, 0
      %v2670 = vsel %vm273, %v2615, 0
      %v2673 = vsel %vm273, %v2616, 0
      %v2676 = vsel %vm273, %v2617, 0
      %v2679 = vsel %vm273, %v2618, 0
      %v2682 = vsel %vm273, %v2619, 0
      %v2685 = vsel %vm273, %v2620, 0
      %v2688 = vsel %vm273, %v2621, 0
      %v2691 = vsel %vm273, %v2622, 0
      %v2694 = vsel %vm273, %v2623, 0
      %v2697 = vsel %vm273, %v2624, 0
      %v2700 = vsel %vm273, %v2625, 0
      %v2703 = vsel %vm273, %v2626, 0
      %v2706 = vsel %vm273, %v2627, 0
      %v2709 = vsel %vm273, %v2628, 0
      %v2712 = vsel %vm273, %v2629, 0
      %v2715 = vsel %vm273, %v2630, 0
      %v2718 = vsel %vm273, %v2631, 0
      %v2721 = vsel %vm273, %v2632, 0
      %v2724 = vsel %vm273, %v2633, 0
      %v2727 = vsel %vm273, %v2634, 0
      %v2730 = vsel %vm273, %v2635, 0
      %v2733 = vsel %vm273, %v2636, 0
      %v2736 = vsel %vm273, %v2637, 0
      %v2739 = vsel %vm273, %v2638, 0
      %v2742 = vsel %vm273, %v2639, 0
      %v2745 = vsel %vm273, %v2640, 0
      %v2748 = vsel %vm273, %v2641, 0
      %v2751 = vsel %vm273, %v2642, 0
      %v2754 = vsel %vm382, %v2644, 0
      %2756 = vmatpush.msra.mxu0 0.0
      %2757 = vmatpush.msra.mxu0 0.0
      %2758 = vmatpush.msra.mxu0 0.0
      %2759 = vmatpush.msra.mxu0 0.0
      %2760 = vmatpush.msra.mxu0 0.0
      %2761 = vmatpush.msra.mxu0 0.0
      %2762 = vmatpush.msra.mxu0 0.0
      %2763 = vmatpush.msra.mxu0 0.0
      %2764 = vmatpush.msra.mxu0 0.0
      %2765 = vmatpush.msra.mxu0 0.0
      %2766 = vmatpush.msra.mxu0 0.0
      %2767 = vmatpush.msra.mxu0 0.0
      %2768 = vmatpush.msra.mxu0 0.0
      %2769 = vmatpush.msra.mxu0 0.0
      %2770 = vmatpush.msra.mxu0 0.0
      %2771 = vmatpush.msra.mxu0 %v2754
      %2772 = vmatmul.f32.gmra.mxu0 %v2646
      %v2773 = vpop.f32.mrf.mxu0
      %v2774 = vadd.f32 0.0, %v2773
      %2775 = vmatmul.f32.gmra.mxu0 %v2649
      %v2776 = vpop.f32.mrf.mxu0
      %v2777 = vadd.f32 0.0, %v2776
      %2778 = vmatmul.f32.gmra.mxu0 %v2652
      %v2779 = vpop.f32.mrf.mxu0
      %v2780 = vadd.f32 0.0, %v2779
      %2781 = vmatmul.f32.gmra.mxu0 %v2655
      %v2782 = vpop.f32.mrf.mxu0
      %v2783 = vadd.f32 0.0, %v2782
      %2784 = vmatmul.f32.gmra.mxu0 %v2658
      %v2785 = vpop.f32.mrf.mxu0
      %v2786 = vadd.f32 0.0, %v2785
      %2787 = vmatmul.f32.gmra.mxu0 %v2661
      %v2788 = vpop.f32.mrf.mxu0
      %v2789 = vadd.f32 0.0, %v2788
      %2790 = vmatmul.f32.gmra.mxu0 %v2664
      %v2791 = vpop.f32.mrf.mxu0
      %v2792 = vadd.f32 0.0, %v2791
      %2793 = vmatmul.f32.gmra.mxu0 %v2667
      %v2794 = vpop.f32.mrf.mxu0
      %v2795 = vadd.f32 0.0, %v2794
      %2796 = vmatmul.f32.gmra.mxu0 %v2670
      %v2797 = vpop.f32.mrf.mxu0
      %v2798 = vadd.f32 0.0, %v2797
      %2799 = vmatmul.f32.gmra.mxu0 %v2673
      %v2800 = vpop.f32.mrf.mxu0
      %v2801 = vadd.f32 0.0, %v2800
      %2802 = vmatmul.f32.gmra.mxu0 %v2676
      %v2803 = vpop.f32.mrf.mxu0
      %v2804 = vadd.f32 0.0, %v2803
      %2805 = vmatmul.f32.gmra.mxu0 %v2679
      %v2806 = vpop.f32.mrf.mxu0
      %v2807 = vadd.f32 0.0, %v2806
      %2808 = vmatmul.f32.gmra.mxu0 %v2682
      %v2809 = vpop.f32.mrf.mxu0
      %v2810 = vadd.f32 0.0, %v2809
      %2811 = vmatmul.f32.gmra.mxu0 %v2685
      %v2812 = vpop.f32.mrf.mxu0
      %v2813 = vadd.f32 0.0, %v2812
      %2814 = vmatmul.f32.gmra.mxu0 %v2688
      %v2815 = vpop.f32.mrf.mxu0
      %v2816 = vadd.f32 0.0, %v2815
      %2817 = vmatmul.f32.gmra.mxu0 %v2691
      %v2818 = vpop.f32.mrf.mxu0
      %v2819 = vadd.f32 0.0, %v2818
      %2820 = vmatmul.f32.gmra.mxu0 %v2694
      %v2821 = vpop.f32.mrf.mxu0
      %v2822 = vadd.f32 0.0, %v2821
      %2823 = vmatmul.f32.gmra.mxu0 %v2697
      %v2824 = vpop.f32.mrf.mxu0
      %v2825 = vadd.f32 0.0, %v2824
      %2826 = vmatmul.f32.gmra.mxu0 %v2700
      %v2827 = vpop.f32.mrf.mxu0
      %v2828 = vadd.f32 0.0, %v2827
      %2829 = vmatmul.f32.gmra.mxu0 %v2703
      %v2830 = vpop.f32.mrf.mxu0
      %v2831 = vadd.f32 0.0, %v2830
      %2832 = vmatmul.f32.gmra.mxu0 %v2706
      %v2833 = vpop.f32.mrf.mxu0
      %v2834 = vadd.f32 0.0, %v2833
      %2835 = vmatmul.f32.gmra.mxu0 %v2709
      %v2836 = vpop.f32.mrf.mxu0
      %v2837 = vadd.f32 0.0, %v2836
      %2838 = vmatmul.f32.gmra.mxu0 %v2712
      %v2839 = vpop.f32.mrf.mxu0
      %v2840 = vadd.f32 0.0, %v2839
      %2841 = vmatmul.f32.gmra.mxu0 %v2715
      %v2842 = vpop.f32.mrf.mxu0
      %v2843 = vadd.f32 0.0, %v2842
      %2844 = vmatmul.f32.gmra.mxu0 %v2718
      %v2845 = vpop.f32.mrf.mxu0
      %v2846 = vadd.f32 0.0, %v2845
      %2847 = vmatmul.f32.gmra.mxu0 %v2721
      %v2848 = vpop.f32.mrf.mxu0
      %v2849 = vadd.f32 0.0, %v2848
      %2850 = vmatmul.f32.gmra.mxu0 %v2724
      %v2851 = vpop.f32.mrf.mxu0
      %v2852 = vadd.f32 0.0, %v2851
      %2853 = vmatmul.f32.gmra.mxu0 %v2727
      %v2854 = vpop.f32.mrf.mxu0
      %v2855 = vadd.f32 0.0, %v2854
      %2856 = vmatmul.f32.gmra.mxu0 %v2730
      %v2857 = vpop.f32.mrf.mxu0
      %v2858 = vadd.f32 0.0, %v2857
      %2859 = vmatmul.f32.gmra.mxu0 %v2733
      %v2860 = vpop.f32.mrf.mxu0
      %v2861 = vadd.f32 0.0, %v2860
      %2862 = vmatmul.f32.gmra.mxu0 %v2736
      %v2863 = vpop.f32.mrf.mxu0
      %v2864 = vadd.f32 0.0, %v2863
      %2865 = vmatmul.f32.gmra.mxu0 %v2739
      %v2866 = vpop.f32.mrf.mxu0
      %v2867 = vadd.f32 0.0, %v2866
      %2868 = vmatmul.f32.gmra.mxu0 %v2742
      %v2869 = vpop.f32.mrf.mxu0
      %v2870 = vadd.f32 0.0, %v2869
      %2871 = vmatmul.f32.gmra.mxu0 %v2745
      %v2872 = vpop.f32.mrf.mxu0
      %v2873 = vadd.f32 0.0, %v2872
      %2874 = vmatmul.f32.gmra.mxu0 %v2748
      %v2875 = vpop.f32.mrf.mxu0
      %v2876 = vadd.f32 0.0, %v2875
      %2877 = vmatmul.f32.gmra.mxu0 %v2751
      %v2878 = vpop.f32.mrf.mxu0
      %v2879 = vadd.f32 0.0, %v2878
      %2880 = vdwg.mxu0
      %v2881 = vadd.f32 %v2571, %v2774
      %v2882 = vadd.f32 %v2572, %v2777
      %v2883 = vadd.f32 %v2573, %v2780
      %v2884 = vadd.f32 %v2574, %v2783
      %v2885 = vadd.f32 %v2575, %v2786
      %v2886 = vadd.f32 %v2576, %v2789
      %v2887 = vadd.f32 %v2577, %v2792
      %v2888 = vadd.f32 %v2578, %v2795
      %v2889 = vadd.f32 %v2579, %v2798
      %v2890 = vadd.f32 %v2580, %v2801
      %v2891 = vadd.f32 %v2581, %v2804
      %v2892 = vadd.f32 %v2582, %v2807
      %v2893 = vadd.f32 %v2583, %v2810
      %v2894 = vadd.f32 %v2584, %v2813
      %v2895 = vadd.f32 %v2585, %v2816
      %v2896 = vadd.f32 %v2586, %v2819
      %v2897 = vadd.f32 %v2587, %v2822
      %v2898 = vadd.f32 %v2588, %v2825
      %v2899 = vadd.f32 %v2589, %v2828
      %v2900 = vadd.f32 %v2590, %v2831
      %v2901 = vadd.f32 %v2591, %v2834
      %v2902 = vadd.f32 %v2592, %v2837
      %v2903 = vadd.f32 %v2593, %v2840
      %v2904 = vadd.f32 %v2594, %v2843
      %v2905 = vadd.f32 %v2595, %v2846
      %v2906 = vadd.f32 %v2596, %v2849
      %v2907 = vadd.f32 %v2597, %v2852
      %v2908 = vadd.f32 %v2598, %v2855
      %v2909 = vadd.f32 %v2599, %v2858
      %v2910 = vadd.f32 %v2600, %v2861
      %v2911 = vadd.f32 %v2601, %v2864
      %v2912 = vadd.f32 %v2602, %v2867
      %v2913 = vadd.f32 %v2603, %v2870
      %v2914 = vadd.f32 %v2604, %v2873
      %v2915 = vadd.f32 %v2605, %v2876
      %v2916 = vadd.f32 %v2606, %v2879
      %v2917 = vld [vmem:[%s2] sm:$0x1]
      %v2919 = vperm.slane %v2917, 0
      %v2921 = vadd.f32 %v2881, %v2919
      %v2922 = vadd.f32 %v2882, %v2919
      %v2923 = vadd.f32 %v2883, %v2919
      %v2924 = vadd.f32 %v2884, %v2919
      %v2925 = vadd.f32 %v2885, %v2919
      %v2926 = vadd.f32 %v2886, %v2919
      %v2927 = vadd.f32 %v2887, %v2919
      %v2928 = vadd.f32 %v2888, %v2919
      %v2929 = vadd.f32 %v2889, %v2919
      %v2930 = vadd.f32 %v2890, %v2919
      %v2931 = vadd.f32 %v2891, %v2919
      %v2932 = vadd.f32 %v2892, %v2919
      %v2933 = vadd.f32 %v2893, %v2919
      %v2934 = vadd.f32 %v2894, %v2919
      %v2935 = vadd.f32 %v2895, %v2919
      %v2936 = vadd.f32 %v2896, %v2919
      %v2937 = vadd.f32 %v2897, %v2919
      %v2938 = vadd.f32 %v2898, %v2919
      %v2939 = vadd.f32 %v2899, %v2919
      %v2940 = vadd.f32 %v2900, %v2919
      %v2941 = vadd.f32 %v2901, %v2919
      %v2942 = vadd.f32 %v2902, %v2919
      %v2943 = vadd.f32 %v2903, %v2919
      %v2944 = vadd.f32 %v2904, %v2919
      %v2945 = vadd.f32 %v2905, %v2919
      %v2946 = vadd.f32 %v2906, %v2919
      %v2947 = vadd.f32 %v2907, %v2919
      %v2948 = vadd.f32 %v2908, %v2919
      %v2949 = vadd.f32 %v2909, %v2919
      %v2950 = vadd.f32 %v2910, %v2919
      %v2951 = vadd.f32 %v2911, %v2919
      %v2952 = vadd.f32 %v2912, %v2919
      %v2953 = vadd.f32 %v2913, %v2919
      %v2954 = vadd.f32 %v2914, %v2919
      %v2955 = vadd.f32 %v2915, %v2919
      %v2956 = vadd.f32 %v2916, %v2919
      %vm2957 = vcmp.ge.f32.partialorder %v2921, 0.0
      %vm2958 = vcmp.ge.f32.partialorder %v2922, 0.0
      %vm2959 = vcmp.ge.f32.partialorder %v2923, 0.0
      %vm2960 = vcmp.ge.f32.partialorder %v2924, 0.0
      %vm2961 = vcmp.ge.f32.partialorder %v2925, 0.0
      %vm2962 = vcmp.ge.f32.partialorder %v2926, 0.0
      %vm2963 = vcmp.ge.f32.partialorder %v2927, 0.0
      %vm2964 = vcmp.ge.f32.partialorder %v2928, 0.0
      %vm2965 = vcmp.ge.f32.partialorder %v2929, 0.0
      %vm2966 = vcmp.ge.f32.partialorder %v2930, 0.0
      %vm2967 = vcmp.ge.f32.partialorder %v2931, 0.0
      %vm2968 = vcmp.ge.f32.partialorder %v2932, 0.0
      %vm2969 = vcmp.ge.f32.partialorder %v2933, 0.0
      %vm2970 = vcmp.ge.f32.partialorder %v2934, 0.0
      %vm2971 = vcmp.ge.f32.partialorder %v2935, 0.0
      %vm2972 = vcmp.ge.f32.partialorder %v2936, 0.0
      %vm2973 = vcmp.ge.f32.partialorder %v2937, 0.0
      %vm2974 = vcmp.ge.f32.partialorder %v2938, 0.0
      %vm2975 = vcmp.ge.f32.partialorder %v2939, 0.0
      %vm2976 = vcmp.ge.f32.partialorder %v2940, 0.0
      %vm2977 = vcmp.ge.f32.partialorder %v2941, 0.0
      %vm2978 = vcmp.ge.f32.partialorder %v2942, 0.0
      %vm2979 = vcmp.ge.f32.partialorder %v2943, 0.0
      %vm2980 = vcmp.ge.f32.partialorder %v2944, 0.0
      %vm2981 = vcmp.ge.f32.partialorder %v2945, 0.0
      %vm2982 = vcmp.ge.f32.partialorder %v2946, 0.0
      %vm2983 = vcmp.ge.f32.partialorder %v2947, 0.0
      %vm2984 = vcmp.ge.f32.partialorder %v2948, 0.0
      %vm2985 = vcmp.ge.f32.partialorder %v2949, 0.0
      %vm2986 = vcmp.ge.f32.partialorder %v2950, 0.0
      %vm2987 = vcmp.ge.f32.partialorder %v2951, 0.0
      %vm2988 = vcmp.ge.f32.partialorder %v2952, 0.0
      %vm2989 = vcmp.ge.f32.partialorder %v2953, 0.0
      %vm2990 = vcmp.ge.f32.partialorder %v2954, 0.0
      %vm2991 = vcmp.ge.f32.partialorder %v2955, 0.0
      %vm2992 = vcmp.ge.f32.partialorder %v2956, 0.0
      %v2993 = vld [vmem:[%s3] sm:$0x1]
      %v2995 = vperm.slane %v2993, 0
      %v2997 = vmul.f32 %v2995, %v2921
      %v2998 = vmul.f32 %v2995, %v2922
      %v2999 = vmul.f32 %v2995, %v2923
      %v3000 = vmul.f32 %v2995, %v2924
      %v3001 = vmul.f32 %v2995, %v2925
      %v3002 = vmul.f32 %v2995, %v2926
      %v3003 = vmul.f32 %v2995, %v2927
      %v3004 = vmul.f32 %v2995, %v2928
      %v3005 = vmul.f32 %v2995, %v2929
      %v3006 = vmul.f32 %v2995, %v2930
      %v3007 = vmul.f32 %v2995, %v2931
      %v3008 = vmul.f32 %v2995, %v2932
      %v3009 = vmul.f32 %v2995, %v2933
      %v3010 = vmul.f32 %v2995, %v2934
      %v3011 = vmul.f32 %v2995, %v2935
      %v3012 = vmul.f32 %v2995, %v2936
      %v3013 = vmul.f32 %v2995, %v2937
      %v3014 = vmul.f32 %v2995, %v2938
      %v3015 = vmul.f32 %v2995, %v2939
      %v3016 = vmul.f32 %v2995, %v2940
      %v3017 = vmul.f32 %v2995, %v2941
      %v3018 = vmul.f32 %v2995, %v2942
      %v3019 = vmul.f32 %v2995, %v2943
      %v3020 = vmul.f32 %v2995, %v2944
      %v3021 = vmul.f32 %v2995, %v2945
      %v3022 = vmul.f32 %v2995, %v2946
      %v3023 = vmul.f32 %v2995, %v2947
      %v3024 = vmul.f32 %v2995, %v2948
      %v3025 = vmul.f32 %v2995, %v2949
      %v3026 = vmul.f32 %v2995, %v2950
      %v3027 = vmul.f32 %v2995, %v2951
      %v3028 = vmul.f32 %v2995, %v2952
      %v3029 = vmul.f32 %v2995, %v2953
      %v3030 = vmul.f32 %v2995, %v2954
      %v3031 = vmul.f32 %v2995, %v2955
      %v3032 = vmul.f32 %v2995, %v2956
      %v3033 = vsel %vm2957, %v2921, %v2997
      %v3034 = vsel %vm2958, %v2922, %v2998
      %v3035 = vsel %vm2959, %v2923, %v2999
      %v3036 = vsel %vm2960, %v2924, %v3000
      %v3037 = vsel %vm2961, %v2925, %v3001
      %v3038 = vsel %vm2962, %v2926, %v3002
      %v3039 = vsel %vm2963, %v2927, %v3003
      %v3040 = vsel %vm2964, %v2928, %v3004
      %v3041 = vsel %vm2965, %v2929, %v3005
      %v3042 = vsel %vm2966, %v2930, %v3006
      %v3043 = vsel %vm2967, %v2931, %v3007
      %v3044 = vsel %vm2968, %v2932, %v3008
      %v3045 = vsel %vm2969, %v2933, %v3009
      %v3046 = vsel %vm2970, %v2934, %v3010
      %v3047 = vsel %vm2971, %v2935, %v3011
      %v3048 = vsel %vm2972, %v2936, %v3012
      %v3049 = vsel %vm2973, %v2937, %v3013
      %v3050 = vsel %vm2974, %v2938, %v3014
      %v3051 = vsel %vm2975, %v2939, %v3015
      %v3052 = vsel %vm2976, %v2940, %v3016
      %v3053 = vsel %vm2977, %v2941, %v3017
      %v3054 = vsel %vm2978, %v2942, %v3018
      %v3055 = vsel %vm2979, %v2943, %v3019
      %v3056 = vsel %vm2980, %v2944, %v3020
      %v3057 = vsel %vm2981, %v2945, %v3021
      %v3058 = vsel %vm2982, %v2946, %v3022
      %v3059 = vsel %vm2983, %v2947, %v3023
      %v3060 = vsel %vm2984, %v2948, %v3024
      %v3061 = vsel %vm2985, %v2949, %v3025
      %v3062 = vsel %vm2986, %v2950, %v3026
      %v3063 = vsel %vm2987, %v2951, %v3027
      %v3064 = vsel %vm2988, %v2952, %v3028
      %v3065 = vsel %vm2989, %v2953, %v3029
      %v3066 = vsel %vm2990, %v2954, %v3030
      %v3067 = vsel %vm2991, %v2955, %v3031
      %v3068 = vsel %vm2992, %v2956, %v3032
      %vm3069 = vcmask 64512
      %3070 = vst.msk [vmem:[%s197] sm:$0xff] %vm3069, %v3033
      %3071 = vst.msk [vmem:[%s197 + $0x8] sm:$0xff] %vm3069, %v3034
      %3072 = vst.msk [vmem:[%s197 + $0x10] sm:$0xff] %vm3069, %v3035
      %3073 = vst.msk [vmem:[%s197 + $0x18] sm:$0xff] %vm3069, %v3036
      %3074 = vst.msk [vmem:[%s197 + $0x20] sm:$0xff] %vm3069, %v3037
      %3075 = vst.msk [vmem:[%s197 + $0x28] sm:$0xff] %vm3069, %v3038
      %3076 = vst.msk [vmem:[%s197 + $0x30] sm:$0xff] %vm3069, %v3039
      %3077 = vst.msk [vmem:[%s197 + $0x38] sm:$0xff] %vm3069, %v3040
      %3078 = vst.msk [vmem:[%s197 + $0x40] sm:$0xff] %vm3069, %v3041
      %3079 = vst.msk [vmem:[%s197 + $0x48] sm:$0xff] %vm3069, %v3042
      %3080 = vst.msk [vmem:[%s197 + $0x50] sm:$0xff] %vm3069, %v3043
      %3081 = vst.msk [vmem:[%s197 + $0x58] sm:$0xff] %vm3069, %v3044
      %3082 = vst.msk [vmem:[%s197 + $0x60] sm:$0xff] %vm3069, %v3045
      %3083 = vst.msk [vmem:[%s197 + $0x68] sm:$0xff] %vm3069, %v3046
      %3084 = vst.msk [vmem:[%s197 + $0x70] sm:$0xff] %vm3069, %v3047
      %3085 = vst.msk [vmem:[%s197 + $0x78] sm:$0xff] %vm3069, %v3048
      %3086 = vst.msk [vmem:[%s197 + $0x80] sm:$0xff] %vm3069, %v3049
      %3087 = vst.msk [vmem:[%s197 + $0x88] sm:$0xff] %vm3069, %v3050
      %3088 = vst.msk [vmem:[%s197 + $0x90] sm:$0xff] %vm3069, %v3051
      %3089 = vst.msk [vmem:[%s197 + $0x98] sm:$0xff] %vm3069, %v3052
      %3090 = vst.msk [vmem:[%s197 + $0xa0] sm:$0xff] %vm3069, %v3053
      %3091 = vst.msk [vmem:[%s197 + $0xa8] sm:$0xff] %vm3069, %v3054
      %3092 = vst.msk [vmem:[%s197 + $0xb0] sm:$0xff] %vm3069, %v3055
      %3093 = vst.msk [vmem:[%s197 + $0xb8] sm:$0xff] %vm3069, %v3056
      %3094 = vst.msk [vmem:[%s197 + $0xc0] sm:$0xff] %vm3069, %v3057
      %3095 = vst.msk [vmem:[%s197 + $0xc8] sm:$0xff] %vm3069, %v3058
      %3096 = vst.msk [vmem:[%s197 + $0xd0] sm:$0xff] %vm3069, %v3059
      %3097 = vst.msk [vmem:[%s197 + $0xd8] sm:$0xff] %vm3069, %v3060
      %3098 = vst.msk [vmem:[%s197 + $0xe0] sm:$0xff] %vm3069, %v3061
      %3099 = vst.msk [vmem:[%s197 + $0xe8] sm:$0xff] %vm3069, %v3062
      %3100 = vst.msk [vmem:[%s197 + $0xf0] sm:$0xff] %vm3069, %v3063
      %3101 = vst.msk [vmem:[%s197 + $0xf8] sm:$0xff] %vm3069, %v3064
      %3102 = vst.msk [vmem:[%s197 + $0x100] sm:$0xff] %vm3069, %v3065
      %3103 = vst.msk [vmem:[%s197 + $0x108] sm:$0xff] %vm3069, %v3066
      %3104 = vst.msk [vmem:[%s197 + $0x110] sm:$0xff] %vm3069, %v3067
      %3105 = vst.msk [vmem:[%s197 + $0x118] sm:$0xff] %vm3069, %v3068
      %p3106 = scmp.lt.s32.totalorder %s15, 1
      %s3107 = scalar_select %p3106, %s15, 1
      %s3108 = smul.addr %s3107, 36
      %s3109 = smul.addr %s3108, 8
      %s3110 = scalar_lea.vmem %s4, %s3109
      // Predicated region
      $region37: #{tpu_custom_call.1} parent=35 // pred_check
        %p3111 = pneg %p122
      $region38: #{tpu_custom_call.1} parent=35 // pred_check_branch
        %3113 = sbr.rel (%p3111) target = $region40
      $region39: #{tpu_custom_call.1} parent=35 // pred_region
        _
      $region40: #{tpu_custom_call.1} parent=35 // pred_fallthru
        _
    $region36: #{tpu_custom_call.1} parent=5 // pred_fallthru
      _
    %p3114 = scmp.le.s32.totalorder 2, %s10
    // Predicated region
    $region41: #{tpu_custom_call.1} parent=5 // pred_check
      %p3115 = pneg %p3114
    $region42: #{tpu_custom_call.1} parent=5 // pred_check_branch
      %3117 = sbr.rel (%p3115) target = $region44
    $region43: #{tpu_custom_call.1} parent=5 // pred_region
      %s3118 = ssub.s32 %s10, 2
      // Predicated region
      $region45: #{tpu_custom_call.1} parent=43 // pred_check
        %p3119 = pneg %p128
      $region46: #{tpu_custom_call.1} parent=43 // pred_check_branch
        %3121 = sbr.rel (%p3119) target = $region48
      $region47: #{tpu_custom_call.1} parent=43 // pred_region
        %p3122 = scmp.lt.s32.totalorder %s16, 1
        %s3123 = scalar_select %p3122, %s16, 1
        %s3124 = smul.addr %s3123, 36
        %s3125 = smul.addr %s3124, 8
        %s3126 = scalar_lea.vmem %s4, %s3125
      $region48: #{tpu_custom_call.1} parent=43 // pred_fallthru
        _
    $region44: #{tpu_custom_call.1} parent=5 // pred_fallthru
      _
  $region6: #{tpu_custom_call.1} parent=0 // loop_footer
    %s14 = sadd.s32 1, %s10
  $region7: #{tpu_custom_call.1} parent=0 // loop_footer_branch
    %9 = sbr.rel target = $region3
  $region8: #{tpu_custom_call.1} parent=0 // loop_exit
    _

</llo_original>
